<compile_context>
chip_gen: v7x
topology: tpu7x:2x2x1
jax: 0.10.0
libtpu: 0.0.40
codegen_flags: <defaults>
</compile_context>

<pallas_src>
import functools

import jax
import jax.numpy as jnp
from jax.experimental import pallas as pl
from jax.experimental.pallas import tpu as pltpu

NUM_RES = 4      # four ResLayer blocks in FCNet.feats
LANE = 128       # lane width of a vreg (last dim)
SUBLANE = 8      # sublane count of a vreg (second-to-last dim)
MAX_TB = 1024    # max batch-tile rows (double-buffered x/out tiles stay ~2-4 MiB)
VMEM_SAFE_DEFAULT = 12 * 1024 * 1024   # below this, every chip's scoped default is fine


def _round_up(n, m):
    return ((n + m - 1) // m) * m


def _pad_axis(a, axis, new_size):
    pad = new_size - a.shape[axis]
    if pad == 0:
        return a
    widths = [(0, 0)] * a.ndim
    widths[axis] = (0, pad)
    return jnp.pad(a, widths)   # zero padding (keeps padded lanes exactly 0)


def fcnet_feats_kernel(x_ref, w0_ref, b0_ref,
                       rw1_ref, rb1_ref, rw2_ref, rb2_ref,
                       out_ref):
    """feats() forward for one (TB, K) batch tile; bf16 weights resident in VMEM."""
    cdt = w0_ref.dtype                     # bf16 compute dtype for MXU operands
    x = x_ref[...].astype(cdt)

    # Initial Linear(num_inputs, num_filts) + ReLU (f32 accumulation)
    h = jnp.dot(x, w0_ref[...], preferred_element_type=jnp.float32) + b0_ref[...]
    h = jnp.maximum(h, 0.0)

    # Four residual MLP blocks (static unroll; dropout == identity in eval mode)
    for i in range(NUM_RES):
        y = jnp.dot(h.astype(cdt), rw1_ref[i],
                    preferred_element_type=jnp.float32) + rb1_ref[i]
        y = jnp.maximum(y, 0.0)
        y = jnp.dot(y.astype(cdt), rw2_ref[i],
                    preferred_element_type=jnp.float32) + rb2_ref[i]
        y = jnp.maximum(y, 0.0)
        h = h + y

    out_ref[...] = h.astype(out_ref.dtype)


@functools.partial(jax.jit, static_argnames=("max_tile_batch",))
def fcnet_feats(x, w0, b0, rw1, rb1, rw2, rb2, *, max_tile_batch=MAX_TB):
    """Pallas wrapper. x: (B, num_inputs) f32 -> loc_emb: (B, num_filts) f32."""
    B, K = x.shape
    F = w0.shape[1]
    Fp = _round_up(F, LANE)                # lane-dense hidden width

    # Batch tile: multiple of 8 sublanes, capped so the grid has >= 2 tiles when
    # B > 8 (keeps both v7x TensorCores busy), and capped at max_tile_batch.
    TB = min(max_tile_batch, _round_up(pl.cdiv(B, 2), SUBLANE))
    TB = max(SUBLANE, (TB // SUBLANE) * SUBLANE)
    n_tiles = pl.cdiv(B, TB)               # ragged last tile handled by Pallas

    cdt = jnp.bfloat16
    # Weights: output dims zero-padded to Fp (padded cols/biases are exact zeros, so
    # ReLU + residual keep them zero); input dim of w0 stays at K (unpadded).
    w0p = _pad_axis(w0, 1, Fp).astype(cdt)
    b0p = _pad_axis(b0, 1, Fp)
    rw1p = _pad_axis(_pad_axis(rw1, 1, Fp), 2, Fp).astype(cdt)
    rb1p = _pad_axis(rb1, 2, Fp)
    rw2p = _pad_axis(_pad_axis(rw2, 1, Fp), 2, Fp).astype(cdt)
    rb2p = _pad_axis(rb2, 2, Fp)

    # Advisory cost for XLA's scheduler.
    flops = 2 * B * (K * Fp + 2 * NUM_RES * Fp * Fp)
    bytes_accessed = (4 * B * K + 4 * B * Fp                     # x in, out
                      + 2 * (K * Fp + 2 * NUM_RES * Fp * Fp)     # bf16 weights
                      + 4 * (1 + 2 * NUM_RES) * Fp)              # f32 biases

    # VMEM estimate: double-buffered x/out tiles + double-buffered resident weights.
    vmem_est = (2 * TB * K * 4 + 2 * TB * Fp * 4
                + 2 * (K * Fp + 2 * NUM_RES * Fp * Fp) * 2
                + 2 * (1 + 2 * NUM_RES) * Fp * 4)
    vmem_limit = None if vmem_est < VMEM_SAFE_DEFAULT else min(
        2 * vmem_est, 60 * 1024 * 1024)

    out_p = pl.pallas_call(
        fcnet_feats_kernel,
        out_shape=jax.ShapeDtypeStruct((B, Fp), x.dtype),
        grid=(n_tiles,),
        in_specs=[
            # streamed batch tiles of x; feature dim K kept at full extent (unpadded)
            pl.BlockSpec((TB, K), lambda i: (i, 0)),
            # weights / biases: constant index_map -> DMA'd once, resident thereafter
            pl.BlockSpec((K, Fp), lambda i: (0, 0)),
            pl.BlockSpec((1, Fp), lambda i: (0, 0)),
            pl.BlockSpec((NUM_RES, Fp, Fp), lambda i: (0, 0, 0)),
            pl.BlockSpec((NUM_RES, 1, Fp), lambda i: (0, 0, 0)),
            pl.BlockSpec((NUM_RES, Fp, Fp), lambda i: (0, 0, 0)),
            pl.BlockSpec((NUM_RES, 1, Fp), lambda i: (0, 0, 0)),
        ],
        out_specs=pl.BlockSpec((TB, Fp), lambda i: (i, 0)),
        compiler_params=pltpu.CompilerParams(
            # batch tiles are independent -> shard across TensorCores on v7x
            dimension_semantics=("parallel",),
            vmem_limit_bytes=vmem_limit),
        cost_estimate=pl.CostEstimate(
            flops=flops, transcendentals=0, bytes_accessed=bytes_accessed),
    )(x, w0p, b0p, rw1p, rb1p, rw2p, rb2p)

    # Strip the lane padding of the hidden dim before returning to the caller.
    return out_p if F == Fp else out_p[:, :F]


def init_params(key, num_inputs, num_filts):
    """PyTorch-Linear-style uniform(-1/sqrt(fan_in), +1/sqrt(fan_in)) init.

    Weights stored as (in_features, out_features); biases as (1, out) / (R, 1, out).
    """
    ks = jax.random.split(key, 2 + 4 * NUM_RES)
    bound0 = 1.0 / jnp.sqrt(num_inputs)
    w0 = jax.random.uniform(ks[0], (num_inputs, num_filts), jnp.float32, -bound0, bound0)
    b0 = jax.random.uniform(ks[1], (1, num_filts), jnp.float32, -bound0, bound0)

    boundf = 1.0 / jnp.sqrt(num_filts)
    rw1, rb1, rw2, rb2 = [], [], [], []
    for r in range(NUM_RES):
        k = ks[2 + 4 * r: 2 + 4 * (r + 1)]
        rw1.append(jax.random.uniform(k[0], (num_filts, num_filts), jnp.float32, -boundf, boundf))
        rb1.append(jax.random.uniform(k[1], (1, num_filts), jnp.float32, -boundf, boundf))
        rw2.append(jax.random.uniform(k[2], (num_filts, num_filts), jnp.float32, -boundf, boundf))
        rb2.append(jax.random.uniform(k[3], (1, num_filts), jnp.float32, -boundf, boundf))
    return (w0, b0,
            jnp.stack(rw1), jnp.stack(rb1),
            jnp.stack(rw2), jnp.stack(rb2))


def fcnet_feats_ref(x, w0, b0, rw1, rb1, rw2, rb2, compute_dtype=jnp.bfloat16):
    """Pure-JAX reference (same bf16-operand / f32-accumulate numerics as the kernel)."""
    def mm(a, w):
        return jnp.dot(a.astype(compute_dtype), w.astype(compute_dtype),
                       preferred_element_type=jnp.float32)
    h = jnp.maximum(mm(x, w0) + b0, 0.0)
    for i in range(NUM_RES):
        y = jnp.maximum(mm(h, rw1[i]) + rb1[i], 0.0)
        y = jnp.maximum(mm(y, rw2[i]) + rb2[i], 0.0)
        h = h + y
    return h


if __name__ == "__main__":
    num_inputs = 16   # e.g. encoded (lon, lat, date) features
    num_filts = 32    # hidden width of FCNet
    batch = 24

    key = jax.random.PRNGKey(0)
    kx, kp = jax.random.split(key)
    x = jax.random.normal(kx, (batch, num_inputs), dtype=jnp.float32)
    params = init_params(kp, num_inputs, num_filts)

    ref = fcnet_feats_ref(x, *params)

    # Default tiling: TB=16 -> grid=(2,), ragged last tile (24 % 16 = 8 valid rows).
    loc_emb = jax.block_until_ready(fcnet_feats(x, *params))
    assert loc_emb.shape == (batch, num_filts)
    assert jnp.allclose(loc_emb, ref, atol=2e-2, rtol=2e-2), \
        float(jnp.max(jnp.abs(loc_emb - ref)))

    # Smaller tile: TB=8 -> grid=(3,), exact tiles; exercises the streamed path.
    loc_emb_tiled = jax.block_until_ready(fcnet_feats(x, *params, max_tile_batch=8))
    assert jnp.allclose(loc_emb_tiled, ref, atol=2e-2, rtol=2e-2)

    print("KERNEL_OK")
</pallas_src>

<mosaic_0001>
module attributes {stable_mosaic.version = 11 : i64} {
  func.func @fcnet_feats_kernel(%arg0: i32, %arg1: memref<16x16xf32, #tpu.memory_space<vmem>>, %arg2: memref<16x128xbf16, #tpu.memory_space<vmem>>, %arg3: memref<1x128xf32, #tpu.memory_space<vmem>>, %arg4: memref<4x128x128xbf16, #tpu.memory_space<vmem>>, %arg5: memref<4x1x128xf32, #tpu.memory_space<vmem>>, %arg6: memref<4x128x128xbf16, #tpu.memory_space<vmem>>, %arg7: memref<4x1x128xf32, #tpu.memory_space<vmem>>, %arg8: memref<16x128xf32, #tpu.memory_space<vmem>>) attributes {dimension_semantics = [#tpu.dimension_semantics<parallel>], iteration_bounds = array<i64: 2>, scalar_prefetch = 0 : i64, scratch_operands = 0 : i64, tpu.core_type = #tpu.core_type<tc>, window_params = [{transform_indices = @transform_0, window_bounds = array<i64: 16, 16>}, {pipeline_mode = #tpu.pipeline_mode<synchronous>, transform_indices = @transform_1, window_bounds = array<i64: 16, 128>}, {pipeline_mode = #tpu.pipeline_mode<synchronous>, transform_indices = @transform_2, window_bounds = array<i64: 1, 128>}, {pipeline_mode = #tpu.pipeline_mode<synchronous>, transform_indices = @transform_3, window_bounds = array<i64: 4, 128, 128>}, {pipeline_mode = #tpu.pipeline_mode<synchronous>, transform_indices = @transform_4, window_bounds = array<i64: 4, 1, 128>}, {pipeline_mode = #tpu.pipeline_mode<synchronous>, transform_indices = @transform_5, window_bounds = array<i64: 4, 128, 128>}, {pipeline_mode = #tpu.pipeline_mode<synchronous>, transform_indices = @transform_6, window_bounds = array<i64: 4, 1, 128>}, {transform_indices = @transform_7, window_bounds = array<i64: 16, 128>}]} {
    %c0 = arith.constant 0 : index
    %c0_0 = arith.constant 0 : index
    %0 = vector.load %arg1[%c0, %c0_0] : memref<16x16xf32, #tpu.memory_space<vmem>>, vector<16x16xf32>
    %1 = arith.truncf %0 : vector<16x16xf32> to vector<16x16xbf16>
    %c0_1 = arith.constant 0 : index
    %c0_2 = arith.constant 0 : index
    %2 = vector.load %arg2[%c0_1, %c0_2] : memref<16x128xbf16, #tpu.memory_space<vmem>>, vector<16x128xbf16>
    %cst = arith.constant dense<0.000000e+00> : vector<16x128xf32>
    %3 = tpu.matmul %1, %2, %cst {dimension_numbers = #tpu.dot_dimension_numbers<[1], [0], [0], [1], [0, 0, 1, 1], [], []>} : vector<16x16xbf16>, vector<16x128xbf16>, vector<16x128xf32> -> vector<16x128xf32>
    %c0_3 = arith.constant 0 : index
    %c0_4 = arith.constant 0 : index
    %4 = vector.load %arg3[%c0_3, %c0_4] : memref<1x128xf32, #tpu.memory_space<vmem>>, vector<1x128xf32>
    %5 = vector.broadcast %4 : vector<1x128xf32> to vector<16x128xf32>
    %6 = arith.addf %3, %5 : vector<16x128xf32>
    %cst_5 = arith.constant 0.000000e+00 : f32
    %7 = vector.broadcast %cst_5 : f32 to vector<16x128xf32>
    %8 = arith.maximumf %6, %7 : vector<16x128xf32>
    %9 = arith.truncf %8 : vector<16x128xf32> to vector<16x128xbf16>
    %c0_6 = arith.constant 0 : index
    %c0_7 = arith.constant 0 : index
    %c0_8 = arith.constant 0 : index
    %10 = vector.load %arg4[%c0_6, %c0_7, %c0_8] : memref<4x128x128xbf16, #tpu.memory_space<vmem>>, vector<1x128x128xbf16>
    %11 = vector.shape_cast %10 : vector<1x128x128xbf16> to vector<128x128xbf16>
    %cst_9 = arith.constant dense<0.000000e+00> : vector<16x128xf32>
    %12 = tpu.matmul %9, %11, %cst_9 {dimension_numbers = #tpu.dot_dimension_numbers<[1], [0], [0], [1], [0, 0, 1, 1], [], []>} : vector<16x128xbf16>, vector<128x128xbf16>, vector<16x128xf32> -> vector<16x128xf32>
    %c0_10 = arith.constant 0 : index
    %c0_11 = arith.constant 0 : index
    %c0_12 = arith.constant 0 : index
    %13 = vector.load %arg5[%c0_10, %c0_11, %c0_12] : memref<4x1x128xf32, #tpu.memory_space<vmem>>, vector<1x1x128xf32>
    %14 = vector.shape_cast %13 : vector<1x1x128xf32> to vector<1x128xf32>
    %15 = vector.broadcast %14 : vector<1x128xf32> to vector<16x128xf32>
    %16 = arith.addf %12, %15 : vector<16x128xf32>
    %cst_13 = arith.constant 0.000000e+00 : f32
    %17 = vector.broadcast %cst_13 : f32 to vector<16x128xf32>
    %18 = arith.maximumf %16, %17 : vector<16x128xf32>
    %19 = arith.truncf %18 : vector<16x128xf32> to vector<16x128xbf16>
    %c0_14 = arith.constant 0 : index
    %c0_15 = arith.constant 0 : index
    %c0_16 = arith.constant 0 : index
    %20 = vector.load %arg6[%c0_14, %c0_15, %c0_16] : memref<4x128x128xbf16, #tpu.memory_space<vmem>>, vector<1x128x128xbf16>
    %21 = vector.shape_cast %20 : vector<1x128x128xbf16> to vector<128x128xbf16>
    %cst_17 = arith.constant dense<0.000000e+00> : vector<16x128xf32>
    %22 = tpu.matmul %19, %21, %cst_17 {dimension_numbers = #tpu.dot_dimension_numbers<[1], [0], [0], [1], [0, 0, 1, 1], [], []>} : vector<16x128xbf16>, vector<128x128xbf16>, vector<16x128xf32> -> vector<16x128xf32>
    %c0_18 = arith.constant 0 : index
    %c0_19 = arith.constant 0 : index
    %c0_20 = arith.constant 0 : index
    %23 = vector.load %arg7[%c0_18, %c0_19, %c0_20] : memref<4x1x128xf32, #tpu.memory_space<vmem>>, vector<1x1x128xf32>
    %24 = vector.shape_cast %23 : vector<1x1x128xf32> to vector<1x128xf32>
    %25 = vector.broadcast %24 : vector<1x128xf32> to vector<16x128xf32>
    %26 = arith.addf %22, %25 : vector<16x128xf32>
    %cst_21 = arith.constant 0.000000e+00 : f32
    %27 = vector.broadcast %cst_21 : f32 to vector<16x128xf32>
    %28 = arith.maximumf %26, %27 : vector<16x128xf32>
    %29 = arith.addf %8, %28 : vector<16x128xf32>
    %30 = arith.truncf %29 : vector<16x128xf32> to vector<16x128xbf16>
    %c1 = arith.constant 1 : index
    %c0_22 = arith.constant 0 : index
    %c0_23 = arith.constant 0 : index
    %31 = vector.load %arg4[%c1, %c0_22, %c0_23] : memref<4x128x128xbf16, #tpu.memory_space<vmem>>, vector<1x128x128xbf16>
    %32 = vector.shape_cast %31 : vector<1x128x128xbf16> to vector<128x128xbf16>
    %cst_24 = arith.constant dense<0.000000e+00> : vector<16x128xf32>
    %33 = tpu.matmul %30, %32, %cst_24 {dimension_numbers = #tpu.dot_dimension_numbers<[1], [0], [0], [1], [0, 0, 1, 1], [], []>} : vector<16x128xbf16>, vector<128x128xbf16>, vector<16x128xf32> -> vector<16x128xf32>
    %c1_25 = arith.constant 1 : index
    %c0_26 = arith.constant 0 : index
    %c0_27 = arith.constant 0 : index
    %34 = vector.load %arg5[%c1_25, %c0_26, %c0_27] : memref<4x1x128xf32, #tpu.memory_space<vmem>>, vector<1x1x128xf32>
    %35 = vector.shape_cast %34 : vector<1x1x128xf32> to vector<1x128xf32>
    %36 = vector.broadcast %35 : vector<1x128xf32> to vector<16x128xf32>
    %37 = arith.addf %33, %36 : vector<16x128xf32>
    %cst_28 = arith.constant 0.000000e+00 : f32
    %38 = vector.broadcast %cst_28 : f32 to vector<16x128xf32>
    %39 = arith.maximumf %37, %38 : vector<16x128xf32>
    %40 = arith.truncf %39 : vector<16x128xf32> to vector<16x128xbf16>
    %c1_29 = arith.constant 1 : index
    %c0_30 = arith.constant 0 : index
    %c0_31 = arith.constant 0 : index
    %41 = vector.load %arg6[%c1_29, %c0_30, %c0_31] : memref<4x128x128xbf16, #tpu.memory_space<vmem>>, vector<1x128x128xbf16>
    %42 = vector.shape_cast %41 : vector<1x128x128xbf16> to vector<128x128xbf16>
    %cst_32 = arith.constant dense<0.000000e+00> : vector<16x128xf32>
    %43 = tpu.matmul %40, %42, %cst_32 {dimension_numbers = #tpu.dot_dimension_numbers<[1], [0], [0], [1], [0, 0, 1, 1], [], []>} : vector<16x128xbf16>, vector<128x128xbf16>, vector<16x128xf32> -> vector<16x128xf32>
    %c1_33 = arith.constant 1 : index
    %c0_34 = arith.constant 0 : index
    %c0_35 = arith.constant 0 : index
    %44 = vector.load %arg7[%c1_33, %c0_34, %c0_35] : memref<4x1x128xf32, #tpu.memory_space<vmem>>, vector<1x1x128xf32>
    %45 = vector.shape_cast %44 : vector<1x1x128xf32> to vector<1x128xf32>
    %46 = vector.broadcast %45 : vector<1x128xf32> to vector<16x128xf32>
    %47 = arith.addf %43, %46 : vector<16x128xf32>
    %cst_36 = arith.constant 0.000000e+00 : f32
    %48 = vector.broadcast %cst_36 : f32 to vector<16x128xf32>
    %49 = arith.maximumf %47, %48 : vector<16x128xf32>
    %50 = arith.addf %29, %49 : vector<16x128xf32>
    %51 = arith.truncf %50 : vector<16x128xf32> to vector<16x128xbf16>
    %c2 = arith.constant 2 : index
    %c0_37 = arith.constant 0 : index
    %c0_38 = arith.constant 0 : index
    %52 = vector.load %arg4[%c2, %c0_37, %c0_38] : memref<4x128x128xbf16, #tpu.memory_space<vmem>>, vector<1x128x128xbf16>
    %53 = vector.shape_cast %52 : vector<1x128x128xbf16> to vector<128x128xbf16>
    %cst_39 = arith.constant dense<0.000000e+00> : vector<16x128xf32>
    %54 = tpu.matmul %51, %53, %cst_39 {dimension_numbers = #tpu.dot_dimension_numbers<[1], [0], [0], [1], [0, 0, 1, 1], [], []>} : vector<16x128xbf16>, vector<128x128xbf16>, vector<16x128xf32> -> vector<16x128xf32>
    %c2_40 = arith.constant 2 : index
    %c0_41 = arith.constant 0 : index
    %c0_42 = arith.constant 0 : index
    %55 = vector.load %arg5[%c2_40, %c0_41, %c0_42] : memref<4x1x128xf32, #tpu.memory_space<vmem>>, vector<1x1x128xf32>
    %56 = vector.shape_cast %55 : vector<1x1x128xf32> to vector<1x128xf32>
    %57 = vector.broadcast %56 : vector<1x128xf32> to vector<16x128xf32>
    %58 = arith.addf %54, %57 : vector<16x128xf32>
    %cst_43 = arith.constant 0.000000e+00 : f32
    %59 = vector.broadcast %cst_43 : f32 to vector<16x128xf32>
    %60 = arith.maximumf %58, %59 : vector<16x128xf32>
    %61 = arith.truncf %60 : vector<16x128xf32> to vector<16x128xbf16>
    %c2_44 = arith.constant 2 : index
    %c0_45 = arith.constant 0 : index
    %c0_46 = arith.constant 0 : index
    %62 = vector.load %arg6[%c2_44, %c0_45, %c0_46] : memref<4x128x128xbf16, #tpu.memory_space<vmem>>, vector<1x128x128xbf16>
    %63 = vector.shape_cast %62 : vector<1x128x128xbf16> to vector<128x128xbf16>
    %cst_47 = arith.constant dense<0.000000e+00> : vector<16x128xf32>
    %64 = tpu.matmul %61, %63, %cst_47 {dimension_numbers = #tpu.dot_dimension_numbers<[1], [0], [0], [1], [0, 0, 1, 1], [], []>} : vector<16x128xbf16>, vector<128x128xbf16>, vector<16x128xf32> -> vector<16x128xf32>
    %c2_48 = arith.constant 2 : index
    %c0_49 = arith.constant 0 : index
    %c0_50 = arith.constant 0 : index
    %65 = vector.load %arg7[%c2_48, %c0_49, %c0_50] : memref<4x1x128xf32, #tpu.memory_space<vmem>>, vector<1x1x128xf32>
    %66 = vector.shape_cast %65 : vector<1x1x128xf32> to vector<1x128xf32>
    %67 = vector.broadcast %66 : vector<1x128xf32> to vector<16x128xf32>
    %68 = arith.addf %64, %67 : vector<16x128xf32>
    %cst_51 = arith.constant 0.000000e+00 : f32
    %69 = vector.broadcast %cst_51 : f32 to vector<16x128xf32>
    %70 = arith.maximumf %68, %69 : vector<16x128xf32>
    %71 = arith.addf %50, %70 : vector<16x128xf32>
    %72 = arith.truncf %71 : vector<16x128xf32> to vector<16x128xbf16>
    %c3 = arith.constant 3 : index
    %c0_52 = arith.constant 0 : index
    %c0_53 = arith.constant 0 : index
    %73 = vector.load %arg4[%c3, %c0_52, %c0_53] : memref<4x128x128xbf16, #tpu.memory_space<vmem>>, vector<1x128x128xbf16>
    %74 = vector.shape_cast %73 : vector<1x128x128xbf16> to vector<128x128xbf16>
    %cst_54 = arith.constant dense<0.000000e+00> : vector<16x128xf32>
    %75 = tpu.matmul %72, %74, %cst_54 {dimension_numbers = #tpu.dot_dimension_numbers<[1], [0], [0], [1], [0, 0, 1, 1], [], []>} : vector<16x128xbf16>, vector<128x128xbf16>, vector<16x128xf32> -> vector<16x128xf32>
    %c3_55 = arith.constant 3 : index
    %c0_56 = arith.constant 0 : index
    %c0_57 = arith.constant 0 : index
    %76 = vector.load %arg5[%c3_55, %c0_56, %c0_57] : memref<4x1x128xf32, #tpu.memory_space<vmem>>, vector<1x1x128xf32>
    %77 = vector.shape_cast %76 : vector<1x1x128xf32> to vector<1x128xf32>
    %78 = vector.broadcast %77 : vector<1x128xf32> to vector<16x128xf32>
    %79 = arith.addf %75, %78 : vector<16x128xf32>
    %cst_58 = arith.constant 0.000000e+00 : f32
    %80 = vector.broadcast %cst_58 : f32 to vector<16x128xf32>
    %81 = arith.maximumf %79, %80 : vector<16x128xf32>
    %82 = arith.truncf %81 : vector<16x128xf32> to vector<16x128xbf16>
    %c3_59 = arith.constant 3 : index
    %c0_60 = arith.constant 0 : index
    %c0_61 = arith.constant 0 : index
    %83 = vector.load %arg6[%c3_59, %c0_60, %c0_61] : memref<4x128x128xbf16, #tpu.memory_space<vmem>>, vector<1x128x128xbf16>
    %84 = vector.shape_cast %83 : vector<1x128x128xbf16> to vector<128x128xbf16>
    %cst_62 = arith.constant dense<0.000000e+00> : vector<16x128xf32>
    %85 = tpu.matmul %82, %84, %cst_62 {dimension_numbers = #tpu.dot_dimension_numbers<[1], [0], [0], [1], [0, 0, 1, 1], [], []>} : vector<16x128xbf16>, vector<128x128xbf16>, vector<16x128xf32> -> vector<16x128xf32>
    %c3_63 = arith.constant 3 : index
    %c0_64 = arith.constant 0 : index
    %c0_65 = arith.constant 0 : index
    %86 = vector.load %arg7[%c3_63, %c0_64, %c0_65] : memref<4x1x128xf32, #tpu.memory_space<vmem>>, vector<1x1x128xf32>
    %87 = vector.shape_cast %86 : vector<1x1x128xf32> to vector<1x128xf32>
    %88 = vector.broadcast %87 : vector<1x128xf32> to vector<16x128xf32>
    %89 = arith.addf %85, %88 : vector<16x128xf32>
    %cst_66 = arith.constant 0.000000e+00 : f32
    %90 = vector.broadcast %cst_66 : f32 to vector<16x128xf32>
    %91 = arith.maximumf %89, %90 : vector<16x128xf32>
    %92 = arith.addf %71, %91 : vector<16x128xf32>
    %c0_67 = arith.constant 0 : index
    %c0_68 = arith.constant 0 : index
    %93 = vector.load %arg8[%c0_67, %c0_68] : memref<16x128xf32, #tpu.memory_space<vmem>>, vector<16x128xf32>
    tpu.vector_store %arg8[%c0_67, %c0_68], %92 {strides = array<i32>} : memref<16x128xf32, #tpu.memory_space<vmem>>, vector<16x128xf32>,
    return
  }
  func.func @transform_0(%arg0: i32) -> (i32, i32) {
    %c0_i32 = arith.constant 0 : i32
    %c0_i32_0 = arith.constant 0 : i32
    return %arg0, %c0_i32 : i32, i32
  }
  func.func @transform_1(%arg0: i32) -> (i32, i32) {
    %c0_i32 = arith.constant 0 : i32
    %c0_i32_0 = arith.constant 0 : i32
    %c0_i32_1 = arith.constant 0 : i32
    return %c0_i32, %c0_i32_0 : i32, i32
  }
  func.func @transform_2(%arg0: i32) -> (i32, i32) {
    %c0_i32 = arith.constant 0 : i32
    %c0_i32_0 = arith.constant 0 : i32
    %c0_i32_1 = arith.constant 0 : i32
    return %c0_i32, %c0_i32_0 : i32, i32
  }
  func.func @transform_3(%arg0: i32) -> (i32, i32, i32) {
    %c0_i32 = arith.constant 0 : i32
    %c0_i32_0 = arith.constant 0 : i32
    %c0_i32_1 = arith.constant 0 : i32
    %c0_i32_2 = arith.constant 0 : i32
    return %c0_i32, %c0_i32_0, %c0_i32_1 : i32, i32, i32
  }
  func.func @transform_4(%arg0: i32) -> (i32, i32, i32) {
    %c0_i32 = arith.constant 0 : i32
    %c0_i32_0 = arith.constant 0 : i32
    %c0_i32_1 = arith.constant 0 : i32
    %c0_i32_2 = arith.constant 0 : i32
    return %c0_i32, %c0_i32_0, %c0_i32_1 : i32, i32, i32
  }
  func.func @transform_5(%arg0: i32) -> (i32, i32, i32) {
    %c0_i32 = arith.constant 0 : i32
    %c0_i32_0 = arith.constant 0 : i32
    %c0_i32_1 = arith.constant 0 : i32
    %c0_i32_2 = arith.constant 0 : i32
    return %c0_i32, %c0_i32_0, %c0_i32_1 : i32, i32, i32
  }
  func.func @transform_6(%arg0: i32) -> (i32, i32, i32) {
    %c0_i32 = arith.constant 0 : i32
    %c0_i32_0 = arith.constant 0 : i32
    %c0_i32_1 = arith.constant 0 : i32
    %c0_i32_2 = arith.constant 0 : i32
    return %c0_i32, %c0_i32_0, %c0_i32_1 : i32, i32, i32
  }
  func.func @transform_7(%arg0: i32) -> (i32, i32) {
    %c0_i32 = arith.constant 0 : i32
    %c0_i32_0 = arith.constant 0 : i32
    return %arg0, %c0_i32 : i32, i32
  }
}

</mosaic_0001>

<llo_original>
// kernel: fcnet_feats.1
$region0: #{fcnet_feats.1}
  #allocation0 [shape = 'u32[]', space=smem, size = 0x4, offset = 0x4, fixed_abs, tag = 'smem constant byte address 0x4 - core index']
  #allocation1 [shape = 'u32[144,128]{1,0:T(1,128)}', space=vmem, size = 0x12000, scoped, tag = 'internal scratch']
  %s0 = inlined_call_operand.vmem [shape: f32[24,16], index: 0, kind: input, shape index: {}]
  %s1 = inlined_call_operand.vmem [shape: bf16[16,128], index: 1, kind: input, shape index: {}]
  %s2 = inlined_call_operand.vmem [shape: f32[1,128], index: 2, kind: input, shape index: {}]
  %s3 = inlined_call_operand.vmem [shape: bf16[4,128,128], index: 3, kind: input, shape index: {}]
  %s4 = inlined_call_operand.vmem [shape: f32[4,1,128], index: 4, kind: input, shape index: {}]
  %s5 = inlined_call_operand.vmem [shape: bf16[4,128,128], index: 5, kind: input, shape index: {}]
  %s6 = inlined_call_operand.vmem [shape: f32[4,1,128], index: 6, kind: input, shape index: {}]
  %s7 = inlined_call_operand.hbm [shape: f32[24,128], index: 7, kind: output, shape index: {}]
  %s8 = sld [smem:[#allocation0]]
  $region61: #{fcnet_feats.1} parent=0
    _
  %s10 = ssub.s32 1, %s8
  %s11 = scalar_select 0, %s10, %s8
  $region1: #{fcnet_feats.1} parent=0
    #allocation2 [shape = 'u8[16384]{0}', space=vmem, size = 0x4000, scoped, tag = 'output window, operand 0']
    #allocation3 [shape = 's32[2]{0}', space=sflag, size = 0x8, scoped, tag = 'scoped memory for fcnet_feats.1']
    %12 = vsyncpa [#allocation3], 0
    %s13 = scalar_lea.sflag [#allocation3], 1
    %14 = vsyncpa %s13, 0
    loop: start=0, step=1, limit=4
    $region2: #{fcnet_feats.1} parent=1 // loop_pre_header
      _
    $region3: #{fcnet_feats.1} parent=1 // loop_header
      %s16 = sphi 0, %s20
      %p17 = scmp.ge.s32.totalorder %s16, 4
      %s26 = sphi 0, %s28
      %s29 = sphi 0, %s26
      %s30 = sphi 0, %s29
      %s46 = sphi 0, %s30
      %s50 = sphi 0, %s50
      %s52 = sphi 0, %s50
      %s53 = sphi 0, %s52
      %s67 = sphi 0, %s53
      %s71 = sphi 0, %s71
      %s73 = sphi 0, %s71
      %s74 = sphi 0, %s73
      %s88 = sphi 0, %s74
      %s92 = sphi 0, %s92
      %s94 = sphi 0, %s92
      %s95 = sphi 0, %s94
      %s109 = sphi 0, %s95
      %s113 = sphi 0, %s113
      %s115 = sphi 0, %s113
      %s116 = sphi 0, %s115
      %s130 = sphi 0, %s116
      %s134 = sphi 0, %s134
      %s136 = sphi 0, %s134
      %s137 = sphi 0, %s136
      %s151 = sphi 0, %s137
      %s155 = sphi 0, %s155
      %s157 = sphi 0, %s155
      %s158 = sphi 0, %s157
      %s172 = sphi 0, %s158
      %s178 = sphi 0, %s180
      %s181 = sphi 0, %s178
      %s182 = sphi 0, %s181
      %s198 = sphi 0, %s182
    $region4: #{fcnet_feats.1} parent=1 // loop_header_branch
      %19 = sbr.rel (%p17) target = $region8
    $region5: #{fcnet_feats.1} parent=1 // loop_body
      %s21 = ssub.s32 %s16, 1
      %s22 = ssub.s32 %s16, 2
      %s23 = sadd.s32 %s16, 1
      %s24 = ssub.s32 %s16, %s23
      %p25 = scmp.eq.s32.totalorder %s24, 0
      %s27 = sadd.s32 %s26, 1
      %s28 = scalar_select %p25, %s26, %s27
      %p31 = pneg %p25
      %p32 = scmp.eq.s32.totalorder %s16, 1
      %p33 = por %p31, %p32
      %p34 = scmp.ne.s32.totalorder %s26, %s29
      %p35 = scmp.eq.s32.totalorder %s16, 0
      %p36 = por %p34, %p35
      %p37 = scmp.ne.s32.totalorder %s26, %s29
      %p38 = scmp.eq.s32.totalorder %s21, 1
      %p39 = por %p37, %p38
      %p40 = scmp.ne.s32.totalorder %s29, %s30
      %p41 = scmp.eq.s32.totalorder %s21, 0
      %p42 = por %p40, %p41
      %p43 = scmp.ne.s32.totalorder %s29, %s30
      %p44 = scmp.eq.s32.totalorder %s22, 1
      %p45 = por %p43, %p44
      %p47 = scmp.ne.s32.totalorder %s30, %s46
      %p48 = scmp.eq.s32.totalorder %s22, 0
      %p49 = por %p47, %p48
      %s51 = sadd.s32 %s50, 1
      %p54 = scmp.eq.s32.totalorder %s16, 1
      %p55 = scmp.ne.s32.totalorder %s50, %s52
      %p56 = scmp.eq.s32.totalorder %s16, 0
      %p57 = por %p55, %p56
      %p58 = scmp.ne.s32.totalorder %s50, %s52
      %p59 = scmp.eq.s32.totalorder %s21, 1
      %p60 = por %p58, %p59
      %p61 = scmp.ne.s32.totalorder %s52, %s53
      %p62 = scmp.eq.s32.totalorder %s21, 0
      %p63 = por %p61, %p62
      %p64 = scmp.ne.s32.totalorder %s52, %s53
      %p65 = scmp.eq.s32.totalorder %s22, 1
      %p66 = por %p64, %p65
      %p68 = scmp.ne.s32.totalorder %s53, %s67
      %p69 = scmp.eq.s32.totalorder %s22, 0
      %p70 = por %p68, %p69
      %s72 = sadd.s32 %s71, 1
      %p75 = scmp.eq.s32.totalorder %s16, 1
      %p76 = scmp.ne.s32.totalorder %s71, %s73
      %p77 = scmp.eq.s32.totalorder %s16, 0
      %p78 = por %p76, %p77
      %p79 = scmp.ne.s32.totalorder %s71, %s73
      %p80 = scmp.eq.s32.totalorder %s21, 1
      %p81 = por %p79, %p80
      %p82 = scmp.ne.s32.totalorder %s73, %s74
      %p83 = scmp.eq.s32.totalorder %s21, 0
      %p84 = por %p82, %p83
      %p85 = scmp.ne.s32.totalorder %s73, %s74
      %p86 = scmp.eq.s32.totalorder %s22, 1
      %p87 = por %p85, %p86
      %p89 = scmp.ne.s32.totalorder %s74, %s88
      %p90 = scmp.eq.s32.totalorder %s22, 0
      %p91 = por %p89, %p90
      %s93 = sadd.s32 %s92, 1
      %p96 = scmp.eq.s32.totalorder %s16, 1
      %p97 = scmp.ne.s32.totalorder %s92, %s94
      %p98 = scmp.eq.s32.totalorder %s16, 0
      %p99 = por %p97, %p98
      %p100 = scmp.ne.s32.totalorder %s92, %s94
      %p101 = scmp.eq.s32.totalorder %s21, 1
      %p102 = por %p100, %p101
      %p103 = scmp.ne.s32.totalorder %s94, %s95
      %p104 = scmp.eq.s32.totalorder %s21, 0
      %p105 = por %p103, %p104
      %p106 = scmp.ne.s32.totalorder %s94, %s95
      %p107 = scmp.eq.s32.totalorder %s22, 1
      %p108 = por %p106, %p107
      %p110 = scmp.ne.s32.totalorder %s95, %s109
      %p111 = scmp.eq.s32.totalorder %s22, 0
      %p112 = por %p110, %p111
      %s114 = sadd.s32 %s113, 1
      %p117 = scmp.eq.s32.totalorder %s16, 1
      %p118 = scmp.ne.s32.totalorder %s113, %s115
      %p119 = scmp.eq.s32.totalorder %s16, 0
      %p120 = por %p118, %p119
      %p121 = scmp.ne.s32.totalorder %s113, %s115
      %p122 = scmp.eq.s32.totalorder %s21, 1
      %p123 = por %p121, %p122
      %p124 = scmp.ne.s32.totalorder %s115, %s116
      %p125 = scmp.eq.s32.totalorder %s21, 0
      %p126 = por %p124, %p125
      %p127 = scmp.ne.s32.totalorder %s115, %s116
      %p128 = scmp.eq.s32.totalorder %s22, 1
      %p129 = por %p127, %p128
      %p131 = scmp.ne.s32.totalorder %s116, %s130
      %p132 = scmp.eq.s32.totalorder %s22, 0
      %p133 = por %p131, %p132
      %s135 = sadd.s32 %s134, 1
      %p138 = scmp.eq.s32.totalorder %s16, 1
      %p139 = scmp.ne.s32.totalorder %s134, %s136
      %p140 = scmp.eq.s32.totalorder %s16, 0
      %p141 = por %p139, %p140
      %p142 = scmp.ne.s32.totalorder %s134, %s136
      %p143 = scmp.eq.s32.totalorder %s21, 1
      %p144 = por %p142, %p143
      %p145 = scmp.ne.s32.totalorder %s136, %s137
      %p146 = scmp.eq.s32.totalorder %s21, 0
      %p147 = por %p145, %p146
      %p148 = scmp.ne.s32.totalorder %s136, %s137
      %p149 = scmp.eq.s32.totalorder %s22, 1
      %p150 = por %p148, %p149
      %p152 = scmp.ne.s32.totalorder %s137, %s151
      %p153 = scmp.eq.s32.totalorder %s22, 0
      %p154 = por %p152, %p153
      %s156 = sadd.s32 %s155, 1
      %p159 = scmp.eq.s32.totalorder %s16, 1
      %p160 = scmp.ne.s32.totalorder %s155, %s157
      %p161 = scmp.eq.s32.totalorder %s16, 0
      %p162 = por %p160, %p161
      %p163 = scmp.ne.s32.totalorder %s155, %s157
      %p164 = scmp.eq.s32.totalorder %s21, 1
      %p165 = por %p163, %p164
      %p166 = scmp.ne.s32.totalorder %s157, %s158
      %p167 = scmp.eq.s32.totalorder %s21, 0
      %p168 = por %p166, %p167
      %p169 = scmp.ne.s32.totalorder %s157, %s158
      %p170 = scmp.eq.s32.totalorder %s22, 1
      %p171 = por %p169, %p170
      %p173 = scmp.ne.s32.totalorder %s158, %s172
      %p174 = scmp.eq.s32.totalorder %s22, 0
      %p175 = por %p173, %p174
      %s176 = ssub.s32 %s16, %s23
      %p177 = scmp.eq.s32.totalorder %s176, 0
      %s179 = sadd.s32 %s178, 1
      %s180 = scalar_select %p177, %s178, %s179
      %p183 = pneg %p177
      %p184 = scmp.eq.s32.totalorder %s16, 1
      %p185 = por %p183, %p184
      %p186 = scmp.ne.s32.totalorder %s178, %s181
      %p187 = scmp.eq.s32.totalorder %s16, 0
      %p188 = por %p186, %p187
      %p189 = scmp.ne.s32.totalorder %s178, %s181
      %p190 = scmp.eq.s32.totalorder %s21, 1
      %p191 = por %p189, %p190
      %p192 = scmp.ne.s32.totalorder %s181, %s182
      %p193 = scmp.eq.s32.totalorder %s21, 0
      %p194 = por %p192, %p193
      %p195 = scmp.ne.s32.totalorder %s181, %s182
      %p196 = scmp.eq.s32.totalorder %s22, 1
      %p197 = por %p195, %p196
      %p199 = scmp.ne.s32.totalorder %s182, %s198
      %p200 = scmp.eq.s32.totalorder %s22, 0
      %p201 = por %p199, %p200
      %p202 = scmp.le.s32.totalorder 1, %s16
      %p203 = scmp.lt.s32.totalorder %s16, 3
      %p204 = pnand %p202, %p203
      %p205 = pneg %p204
      // Predicated region
      $region9: #{fcnet_feats.1} parent=5 // pred_check
        _
      $region10: #{fcnet_feats.1} parent=5 // pred_check_branch
        %207 = sbr.rel (%p204) target = $region12
      $region11: #{fcnet_feats.1} parent=5 // pred_region
        %s208 = ssub.s32 %s16, 1
        // Predicated region
        $region13: #{fcnet_feats.1} parent=11 // pred_check
          %p209 = pneg %p63
        $region14: #{fcnet_feats.1} parent=11 // pred_check_branch
          %211 = sbr.rel (%p209) target = $region16
        $region15: #{fcnet_feats.1} parent=11 // pred_region
          _
        $region16: #{fcnet_feats.1} parent=11 // pred_fallthru
          _
        // Predicated region
        $region17: #{fcnet_feats.1} parent=11 // pred_check
          %p212 = pneg %p84
        $region18: #{fcnet_feats.1} parent=11 // pred_check_branch
          %214 = sbr.rel (%p212) target = $region20
        $region19: #{fcnet_feats.1} parent=11 // pred_region
          _
        $region20: #{fcnet_feats.1} parent=11 // pred_fallthru
          _
        // Predicated region
        $region21: #{fcnet_feats.1} parent=11 // pred_check
          %p215 = pneg %p105
        $region22: #{fcnet_feats.1} parent=11 // pred_check_branch
          %217 = sbr.rel (%p215) target = $region24
        $region23: #{fcnet_feats.1} parent=11 // pred_region
          _
        $region24: #{fcnet_feats.1} parent=11 // pred_fallthru
          _
        // Predicated region
        $region25: #{fcnet_feats.1} parent=11 // pred_check
          %p218 = pneg %p126
        $region26: #{fcnet_feats.1} parent=11 // pred_check_branch
          %220 = sbr.rel (%p218) target = $region28
        $region27: #{fcnet_feats.1} parent=11 // pred_region
          _
        $region28: #{fcnet_feats.1} parent=11 // pred_fallthru
          _
        // Predicated region
        $region29: #{fcnet_feats.1} parent=11 // pred_check
          %p221 = pneg %p147
        $region30: #{fcnet_feats.1} parent=11 // pred_check_branch
          %223 = sbr.rel (%p221) target = $region32
        $region31: #{fcnet_feats.1} parent=11 // pred_region
          _
        $region32: #{fcnet_feats.1} parent=11 // pred_fallthru
          _
        // Predicated region
        $region33: #{fcnet_feats.1} parent=11 // pred_check
          %p224 = pneg %p168
        $region34: #{fcnet_feats.1} parent=11 // pred_check_branch
          %226 = sbr.rel (%p224) target = $region36
        $region35: #{fcnet_feats.1} parent=11 // pred_region
          _
        $region36: #{fcnet_feats.1} parent=11 // pred_fallthru
          _
      $region12: #{fcnet_feats.1} parent=5 // pred_fallthru
        _
      %p227 = scmp.lt.s32.totalorder %s16, 2
      // Predicated region
      $region37: #{fcnet_feats.1} parent=5 // pred_check
        %p228 = pneg %p227
      $region38: #{fcnet_feats.1} parent=5 // pred_check_branch
        %230 = sbr.rel (%p228) target = $region40
      $region39: #{fcnet_feats.1} parent=5 // pred_region
        // Predicated region
        $region41: #{fcnet_feats.1} parent=39 // pred_check
          %p231 = pneg %p36
        $region42: #{fcnet_feats.1} parent=39 // pred_check_branch
          %233 = sbr.rel (%p231) target = $region44
        $region43: #{fcnet_feats.1} parent=39 // pred_region
          %s234 = smul.u32 2, %s16
          %s235 = ssub.s32 3, %s234
          %p236 = scmp.lt.s32.totalorder %s235, 2
          %s237 = scalar_select %p236, %s235, 2
          %s238 = smul.u32 128, %s237
          %p239 = scmp.lt.s32.totalorder %s234, 2
          %s240 = scalar_select %p239, %s234, 2
          %s241 = smul.addr %s240, 8
          %s242 = scalar_lea.vmem %s0, %s241
          %s243 = smul.u32 2, %s16
          %s244 = ssub.s32 3, %s243
          %p245 = scmp.lt.s32.totalorder %s244, 2
          %s246 = scalar_select %p245, %s244, 2
          %s247 = smul.u32 128, %s246
        $region44: #{fcnet_feats.1} parent=39 // pred_fallthru
          _
      $region40: #{fcnet_feats.1} parent=5 // pred_fallthru
        _
      %p248 = scmp.le.s32.totalorder 1, %s16
      %p249 = scmp.lt.s32.totalorder %s16, 3
      %p250 = pnand %p248, %p249
      %p251 = pneg %p250
      // Predicated region
      $region45: #{fcnet_feats.1} parent=5 // pred_check
        _
      $region46: #{fcnet_feats.1} parent=5 // pred_check_branch
        %253 = sbr.rel (%p250) target = $region48
      $region47: #{fcnet_feats.1} parent=5 // pred_region
        %s254 = ssub.s32 %s16, 1
        %s255 = smul.u32 2, %s21
        %s256 = ssub.s32 3, %s255
        %p257 = scmp.lt.s32.totalorder %s256, 2
        %s258 = scalar_select %p257, %s256, 2
        %s259 = smul.u32 128, %s258
        %p260 = scmp.lt.s32.totalorder %s255, 2
        %s261 = scalar_select %p260, %s255, 2
        %s262 = smul.addr %s261, 8
        %s263 = scalar_lea.vmem %s0, %s262
        %p264 = pneg %p42
        %p265 = pneg %p39
        %p266 = pneg %p63
        %p267 = pneg %p60
        %p268 = pneg %p84
        %p269 = pneg %p81
        %p270 = pneg %p105
        %p271 = pneg %p102
        %p272 = pneg %p126
        %p273 = pneg %p123
        %p274 = pneg %p147
        %p275 = pneg %p144
        %p276 = pneg %p168
        %p277 = pneg %p165
        %p278 = pneg %p194
        %p279 = pneg %p191
        %s280 = sand.u32 %s181, 1
        %s281 = scalar_lea.sflag [#allocation3], %s280
        %s282 = sand.u32 %s181, 1
        %s283 = smul.addr %s282, 16
        %s284 = scalar_lea.vmem [#allocation2], %s283
        %s285 = smul.u32 2, %s21
        %s286 = ssub.s32 3, %s285
        %p287 = scmp.lt.s32.totalorder %s286, 2
        %s288 = scalar_select %p287, %s286, 2
        %s289 = smul.u32 128, %s288
        %p290 = scmp.lt.s32.totalorder %s285, 2
        %s291 = scalar_select %p290, %s285, 2
        %s292 = smul.addr %s291, 8
        %s293 = scalar_lea.vmem %s0, %s292
        %s294 = smul.u32 2, %s21
        %s295 = ssub.s32 3, %s294
        %p296 = scmp.lt.s32.totalorder %s295, 2
        %s297 = scalar_select %p296, %s295, 2
        %s298 = smul.u32 128, %s297
        %s299 = smul.u32 2, %s21
        %s300 = ssub.s32 3, %s299
        %p301 = scmp.lt.s32.totalorder %s300, 2
        %s302 = scalar_select %p301, %s300, 2
        %s303 = smul.u32 128, %s302
        %v305 = vld [vmem:[%s293] sm:$0xff]
        %v306 = vld [vmem:[%s293 + $0x8] sm:$0xff]
        %v307 = vpack.c.bf16 %v306, %v305
        %v308 = vld [vmem:[%s1] sm:$0xf]
        %v309 = vld [vmem:[%s1 + $0x4] sm:$0xf]
        %v310 = vld [vmem:[%s2] sm:$0x1]
        %v312 = vlaneseq
        %v313 = vshrl.u32 %v312, 7
        %v314 = vsub.s32 0, %v313
        %v315 = vrot.slane %v310, %v314
        %v319 = vunpack.c.l.b16 %v308
        %v320 = vunpack.c.l.b16 %v309
        %v321 = vpack.c.b16 %v320, %v319
        %vm323 = vcmask 130048
        %v325 = vsel %vm323, %v307, 0
        %327 = vmatprep.subr.bf16.mxu0 0
        %328 = vmatpush1.bf16.msra.mxu0 %v321
        %329 = vmatprep.subr.bf16.mxu0 0
        %330 = vmatpush1.bf16.msra.mxu0 0
        %331 = vmatprep.subr.bf16.mxu0 0
        %332 = vmatpush1.bf16.msra.mxu0 0
        %333 = vmatprep.subr.bf16.mxu0 0
        %334 = vmatpush1.bf16.msra.mxu0 0
        %335 = vmatprep.subr.bf16.mxu0 0
        %336 = vmatpush1.bf16.msra.mxu0 0
        %337 = vmatprep.subr.bf16.mxu0 0
        %338 = vmatpush1.bf16.msra.mxu0 0
        %339 = vmatprep.subr.bf16.mxu0 0
        %340 = vmatpush1.bf16.msra.mxu0 0
        %341 = vmatprep.subr.bf16.mxu0 0
        %342 = vmatpush1.bf16.msra.mxu0 0
        %343 = vmatprep.subr.bf16.mxu0 0
        %344 = vmatpush1.bf16.msra.mxu0 0
        %345 = vmatprep.subr.bf16.mxu0 0
        %346 = vmatpush1.bf16.msra.mxu0 0
        %347 = vmatprep.subr.bf16.mxu0 0
        %348 = vmatpush1.bf16.msra.mxu0 0
        %349 = vmatprep.subr.bf16.mxu0 0
        %350 = vmatpush1.bf16.msra.mxu0 0
        %351 = vmatprep.subr.bf16.mxu0 0
        %352 = vmatpush1.bf16.msra.mxu0 0
        %353 = vmatprep.subr.bf16.mxu0 0
        %354 = vmatpush1.bf16.msra.mxu0 0
        %355 = vmatprep.subr.bf16.mxu0 0
        %356 = vmatpush1.bf16.msra.mxu0 0
        %357 = vmatprep.subr.bf16.mxu0 0
        %358 = vmatpush1.bf16.msra.mxu0 0
        %359 = vmatprep.mubr.bf16.mxu0 0
        %360 = vmatmul.mubr.bf16.gmra.mrb[0].mxu0 %v325
        %v361 = vpop.f32.mrb[0].mxu0
        %v362 = vadd.f32 %v315, %v361
        %v363 = vpop.f32.mrb[0].mxu0
        %v364 = vpop.f32.mrb[0].mxu0
        %v365 = vadd.f32 %v315, %v364
        %v366 = vpop.f32.mrb[0].mxu0
        %367 = vdwg.mxu0
        %v368 = vmax.f32 %v362, 0.0
        %v369 = vmax.f32 %v365, 0.0
        %v370 = vpack.c.bf16 %v369, %v368
        %v371 = vld [vmem:[%s3] sm:$0xf]
        %v372 = vld [vmem:[%s3 + $0x4] sm:$0xf]
        %v373 = vld [vmem:[%s3 + $0x8] sm:$0xf]
        %v374 = vld [vmem:[%s3 + $0xc] sm:$0xf]
        %v375 = vld [vmem:[%s3 + $0x10] sm:$0xf]
        %v376 = vld [vmem:[%s3 + $0x14] sm:$0xf]
        %v377 = vld [vmem:[%s3 + $0x18] sm:$0xf]
        %v378 = vld [vmem:[%s3 + $0x1c] sm:$0xf]
        %v379 = vld [vmem:[%s3 + $0x20] sm:$0xf]
        %v380 = vld [vmem:[%s3 + $0x24] sm:$0xf]
        %v381 = vld [vmem:[%s3 + $0x28] sm:$0xf]
        %v382 = vld [vmem:[%s3 + $0x2c] sm:$0xf]
        %v383 = vld [vmem:[%s3 + $0x30] sm:$0xf]
        %v384 = vld [vmem:[%s3 + $0x34] sm:$0xf]
        %v385 = vld [vmem:[%s3 + $0x38] sm:$0xf]
        %v386 = vld [vmem:[%s3 + $0x3c] sm:$0xf]
        %v387 = vld [vmem:[%s4] sm:$0x1]
        %v389 = vlaneseq
        %v390 = vshrl.u32 %v389, 7
        %v391 = vsub.s32 0, %v390
        %v392 = vrot.slane %v387, %v391
        %v410 = vunpack.c.l.b16 %v371
        %v411 = vunpack.c.l.b16 %v372
        %v412 = vunpack.c.l.b16 %v373
        %v413 = vunpack.c.l.b16 %v374
        %v414 = vunpack.c.l.b16 %v375
        %v415 = vunpack.c.l.b16 %v376
        %v416 = vunpack.c.l.b16 %v377
        %v417 = vunpack.c.l.b16 %v378
        %v418 = vunpack.c.l.b16 %v379
        %v419 = vunpack.c.l.b16 %v380
        %v420 = vunpack.c.l.b16 %v381
        %v421 = vunpack.c.l.b16 %v382
        %v422 = vunpack.c.l.b16 %v383
        %v423 = vunpack.c.l.b16 %v384
        %v424 = vunpack.c.l.b16 %v385
        %v425 = vunpack.c.l.b16 %v386
        %v426 = vpack.c.b16 %v411, %v410
        %v427 = vpack.c.b16 %v413, %v412
        %v428 = vpack.c.b16 %v415, %v414
        %v429 = vpack.c.b16 %v417, %v416
        %v430 = vpack.c.b16 %v419, %v418
        %v431 = vpack.c.b16 %v421, %v420
        %v432 = vpack.c.b16 %v423, %v422
        %v433 = vpack.c.b16 %v425, %v424
        %442 = vmatprep.subr.bf16.mxu0 0
        %443 = vmatpush1.bf16.msra.mxu0 %v426
        %444 = vmatprep.subr.bf16.mxu0 0
        %445 = vmatpush1.bf16.msra.mxu0 %v427
        %446 = vmatprep.subr.bf16.mxu0 0
        %447 = vmatpush1.bf16.msra.mxu0 %v428
        %448 = vmatprep.subr.bf16.mxu0 0
        %449 = vmatpush1.bf16.msra.mxu0 %v429
        %450 = vmatprep.subr.bf16.mxu0 0
        %451 = vmatpush1.bf16.msra.mxu0 %v430
        %452 = vmatprep.subr.bf16.mxu0 0
        %453 = vmatpush1.bf16.msra.mxu0 %v431
        %454 = vmatprep.subr.bf16.mxu0 0
        %455 = vmatpush1.bf16.msra.mxu0 %v432
        %456 = vmatprep.subr.bf16.mxu0 0
        %457 = vmatpush1.bf16.msra.mxu0 %v433
        %458 = vmatprep.subr.bf16.mxu0 0
        %459 = vmatpush1.bf16.msra.mxu0 0
        %460 = vmatprep.subr.bf16.mxu0 0
        %461 = vmatpush1.bf16.msra.mxu0 0
        %462 = vmatprep.subr.bf16.mxu0 0
        %463 = vmatpush1.bf16.msra.mxu0 0
        %464 = vmatprep.subr.bf16.mxu0 0
        %465 = vmatpush1.bf16.msra.mxu0 0
        %466 = vmatprep.subr.bf16.mxu0 0
        %467 = vmatpush1.bf16.msra.mxu0 0
        %468 = vmatprep.subr.bf16.mxu0 0
        %469 = vmatpush1.bf16.msra.mxu0 0
        %470 = vmatprep.subr.bf16.mxu0 0
        %471 = vmatpush1.bf16.msra.mxu0 0
        %472 = vmatprep.subr.bf16.mxu0 0
        %473 = vmatpush1.bf16.msra.mxu0 0
        %474 = vmatprep.mubr.bf16.mxu0 0
        %475 = vmatmul.mubr.bf16.gmra.mrb[0].mxu0 %v370
        %v476 = vpop.f32.mrb[0].mxu0
        %v477 = vadd.f32 %v392, %v476
        %v478 = vpop.f32.mrb[0].mxu0
        %v479 = vpop.f32.mrb[0].mxu0
        %v480 = vadd.f32 %v392, %v479
        %v481 = vpop.f32.mrb[0].mxu0
        %482 = vdwg.mxu0
        %v483 = vmax.f32 %v477, 0.0
        %v484 = vmax.f32 %v480, 0.0
        %v485 = vpack.c.bf16 %v484, %v483
        %v486 = vld [vmem:[%s5] sm:$0xf]
        %v487 = vld [vmem:[%s5 + $0x4] sm:$0xf]
        %v488 = vld [vmem:[%s5 + $0x8] sm:$0xf]
        %v489 = vld [vmem:[%s5 + $0xc] sm:$0xf]
        %v490 = vld [vmem:[%s5 + $0x10] sm:$0xf]
        %v491 = vld [vmem:[%s5 + $0x14] sm:$0xf]
        %v492 = vld [vmem:[%s5 + $0x18] sm:$0xf]
        %v493 = vld [vmem:[%s5 + $0x1c] sm:$0xf]
        %v494 = vld [vmem:[%s5 + $0x20] sm:$0xf]
        %v495 = vld [vmem:[%s5 + $0x24] sm:$0xf]
        %v496 = vld [vmem:[%s5 + $0x28] sm:$0xf]
        %v497 = vld [vmem:[%s5 + $0x2c] sm:$0xf]
        %v498 = vld [vmem:[%s5 + $0x30] sm:$0xf]
        %v499 = vld [vmem:[%s5 + $0x34] sm:$0xf]
        %v500 = vld [vmem:[%s5 + $0x38] sm:$0xf]
        %v501 = vld [vmem:[%s5 + $0x3c] sm:$0xf]
        %v502 = vld [vmem:[%s6] sm:$0x1]
        %v504 = vlaneseq
        %v505 = vshrl.u32 %v504, 7
        %v506 = vsub.s32 0, %v505
        %v507 = vrot.slane %v502, %v506
        %v525 = vunpack.c.l.b16 %v486
        %v526 = vunpack.c.l.b16 %v487
        %v527 = vunpack.c.l.b16 %v488
        %v528 = vunpack.c.l.b16 %v489
        %v529 = vunpack.c.l.b16 %v490
        %v530 = vunpack.c.l.b16 %v491
        %v531 = vunpack.c.l.b16 %v492
        %v532 = vunpack.c.l.b16 %v493
        %v533 = vunpack.c.l.b16 %v494
        %v534 = vunpack.c.l.b16 %v495
        %v535 = vunpack.c.l.b16 %v496
        %v536 = vunpack.c.l.b16 %v497
        %v537 = vunpack.c.l.b16 %v498
        %v538 = vunpack.c.l.b16 %v499
        %v539 = vunpack.c.l.b16 %v500
        %v540 = vunpack.c.l.b16 %v501
        %v541 = vpack.c.b16 %v526, %v525
        %v542 = vpack.c.b16 %v528, %v527
        %v543 = vpack.c.b16 %v530, %v529
        %v544 = vpack.c.b16 %v532, %v531
        %v545 = vpack.c.b16 %v534, %v533
        %v546 = vpack.c.b16 %v536, %v535
        %v547 = vpack.c.b16 %v538, %v537
        %v548 = vpack.c.b16 %v540, %v539
        %557 = vmatprep.subr.bf16.mxu0 0
        %558 = vmatpush1.bf16.msra.mxu0 %v541
        %559 = vmatprep.subr.bf16.mxu0 0
        %560 = vmatpush1.bf16.msra.mxu0 %v542
        %561 = vmatprep.subr.bf16.mxu0 0
        %562 = vmatpush1.bf16.msra.mxu0 %v543
        %563 = vmatprep.subr.bf16.mxu0 0
        %564 = vmatpush1.bf16.msra.mxu0 %v544
        %565 = vmatprep.subr.bf16.mxu0 0
        %566 = vmatpush1.bf16.msra.mxu0 %v545
        %567 = vmatprep.subr.bf16.mxu0 0
        %568 = vmatpush1.bf16.msra.mxu0 %v546
        %569 = vmatprep.subr.bf16.mxu0 0
        %570 = vmatpush1.bf16.msra.mxu0 %v547
        %571 = vmatprep.subr.bf16.mxu0 0
        %572 = vmatpush1.bf16.msra.mxu0 %v548
        %573 = vmatprep.subr.bf16.mxu0 0
        %574 = vmatpush1.bf16.msra.mxu0 0
        %575 = vmatprep.subr.bf16.mxu0 0
        %576 = vmatpush1.bf16.msra.mxu0 0
        %577 = vmatprep.subr.bf16.mxu0 0
        %578 = vmatpush1.bf16.msra.mxu0 0
        %579 = vmatprep.subr.bf16.mxu0 0
        %580 = vmatpush1.bf16.msra.mxu0 0
        %581 = vmatprep.subr.bf16.mxu0 0
        %582 = vmatpush1.bf16.msra.mxu0 0
        %583 = vmatprep.subr.bf16.mxu0 0
        %584 = vmatpush1.bf16.msra.mxu0 0
        %585 = vmatprep.subr.bf16.mxu0 0
        %586 = vmatpush1.bf16.msra.mxu0 0
        %587 = vmatprep.subr.bf16.mxu0 0
        %588 = vmatpush1.bf16.msra.mxu0 0
        %589 = vmatprep.mubr.bf16.mxu0 0
        %590 = vmatmul.mubr.bf16.gmra.mrb[0].mxu0 %v485
        %v591 = vpop.f32.mrb[0].mxu0
        %v592 = vadd.f32 %v507, %v591
        %v593 = vpop.f32.mrb[0].mxu0
        %v594 = vpop.f32.mrb[0].mxu0
        %v595 = vadd.f32 %v507, %v594
        %v596 = vpop.f32.mrb[0].mxu0
        %597 = vdwg.mxu0
        %v598 = vmax.f32 %v592, 0.0
        %v599 = vmax.f32 %v595, 0.0
        %v600 = vadd.f32 %v368, %v598
        %v601 = vadd.f32 %v369, %v599
        %v602 = vpack.c.bf16 %v601, %v600
        %s603 = scalar_lea.vmem %s3, 64
        %v604 = vld [vmem:[%s603] sm:$0xf]
        %v605 = vld [vmem:[%s603 + $0x4] sm:$0xf]
        %v606 = vld [vmem:[%s603 + $0x8] sm:$0xf]
        %v607 = vld [vmem:[%s603 + $0xc] sm:$0xf]
        %v608 = vld [vmem:[%s603 + $0x10] sm:$0xf]
        %v609 = vld [vmem:[%s603 + $0x14] sm:$0xf]
        %v610 = vld [vmem:[%s603 + $0x18] sm:$0xf]
        %v611 = vld [vmem:[%s603 + $0x1c] sm:$0xf]
        %v612 = vld [vmem:[%s603 + $0x20] sm:$0xf]
        %v613 = vld [vmem:[%s603 + $0x24] sm:$0xf]
        %v614 = vld [vmem:[%s603 + $0x28] sm:$0xf]
        %v615 = vld [vmem:[%s603 + $0x2c] sm:$0xf]
        %v616 = vld [vmem:[%s603 + $0x30] sm:$0xf]
        %v617 = vld [vmem:[%s603 + $0x34] sm:$0xf]
        %v618 = vld [vmem:[%s603 + $0x38] sm:$0xf]
        %v619 = vld [vmem:[%s603 + $0x3c] sm:$0xf]
        %s620 = scalar_lea.vmem %s4, 1
        %v621 = vld [vmem:[%s620] sm:$0x1]
        %v623 = vlaneseq
        %v624 = vshrl.u32 %v623, 7
        %v625 = vsub.s32 0, %v624
        %v626 = vrot.slane %v621, %v625
        %v644 = vunpack.c.l.b16 %v604
        %v645 = vunpack.c.l.b16 %v605
        %v646 = vunpack.c.l.b16 %v606
        %v647 = vunpack.c.l.b16 %v607
        %v648 = vunpack.c.l.b16 %v608
        %v649 = vunpack.c.l.b16 %v609
        %v650 = vunpack.c.l.b16 %v610
        %v651 = vunpack.c.l.b16 %v611
        %v652 = vunpack.c.l.b16 %v612
        %v653 = vunpack.c.l.b16 %v613
        %v654 = vunpack.c.l.b16 %v614
        %v655 = vunpack.c.l.b16 %v615
        %v656 = vunpack.c.l.b16 %v616
        %v657 = vunpack.c.l.b16 %v617
        %v658 = vunpack.c.l.b16 %v618
        %v659 = vunpack.c.l.b16 %v619
        %v660 = vpack.c.b16 %v645, %v644
        %v661 = vpack.c.b16 %v647, %v646
        %v662 = vpack.c.b16 %v649, %v648
        %v663 = vpack.c.b16 %v651, %v650
        %v664 = vpack.c.b16 %v653, %v652
        %v665 = vpack.c.b16 %v655, %v654
        %v666 = vpack.c.b16 %v657, %v656
        %v667 = vpack.c.b16 %v659, %v658
        %676 = vmatprep.subr.bf16.mxu0 0
        %677 = vmatpush1.bf16.msra.mxu0 %v660
        %678 = vmatprep.subr.bf16.mxu0 0
        %679 = vmatpush1.bf16.msra.mxu0 %v661
        %680 = vmatprep.subr.bf16.mxu0 0
        %681 = vmatpush1.bf16.msra.mxu0 %v662
        %682 = vmatprep.subr.bf16.mxu0 0
        %683 = vmatpush1.bf16.msra.mxu0 %v663
        %684 = vmatprep.subr.bf16.mxu0 0
        %685 = vmatpush1.bf16.msra.mxu0 %v664
        %686 = vmatprep.subr.bf16.mxu0 0
        %687 = vmatpush1.bf16.msra.mxu0 %v665
        %688 = vmatprep.subr.bf16.mxu0 0
        %689 = vmatpush1.bf16.msra.mxu0 %v666
        %690 = vmatprep.subr.bf16.mxu0 0
        %691 = vmatpush1.bf16.msra.mxu0 %v667
        %692 = vmatprep.subr.bf16.mxu0 0
        %693 = vmatpush1.bf16.msra.mxu0 0
        %694 = vmatprep.subr.bf16.mxu0 0
        %695 = vmatpush1.bf16.msra.mxu0 0
        %696 = vmatprep.subr.bf16.mxu0 0
        %697 = vmatpush1.bf16.msra.mxu0 0
        %698 = vmatprep.subr.bf16.mxu0 0
        %699 = vmatpush1.bf16.msra.mxu0 0
        %700 = vmatprep.subr.bf16.mxu0 0
        %701 = vmatpush1.bf16.msra.mxu0 0
        %702 = vmatprep.subr.bf16.mxu0 0
        %703 = vmatpush1.bf16.msra.mxu0 0
        %704 = vmatprep.subr.bf16.mxu0 0
        %705 = vmatpush1.bf16.msra.mxu0 0
        %706 = vmatprep.subr.bf16.mxu0 0
        %707 = vmatpush1.bf16.msra.mxu0 0
        %708 = vmatprep.mubr.bf16.mxu0 0
        %709 = vmatmul.mubr.bf16.gmra.mrb[0].mxu0 %v602
        %v710 = vpop.f32.mrb[0].mxu0
        %v711 = vadd.f32 %v626, %v710
        %v712 = vpop.f32.mrb[0].mxu0
        %v713 = vpop.f32.mrb[0].mxu0
        %v714 = vadd.f32 %v626, %v713
        %v715 = vpop.f32.mrb[0].mxu0
        %716 = vdwg.mxu0
        %v717 = vmax.f32 %v711, 0.0
        %v718 = vmax.f32 %v714, 0.0
        %v719 = vpack.c.bf16 %v718, %v717
        %s720 = scalar_lea.vmem %s5, 64
        %v721 = vld [vmem:[%s720] sm:$0xf]
        %v722 = vld [vmem:[%s720 + $0x4] sm:$0xf]
        %v723 = vld [vmem:[%s720 + $0x8] sm:$0xf]
        %v724 = vld [vmem:[%s720 + $0xc] sm:$0xf]
        %v725 = vld [vmem:[%s720 + $0x10] sm:$0xf]
        %v726 = vld [vmem:[%s720 + $0x14] sm:$0xf]
        %v727 = vld [vmem:[%s720 + $0x18] sm:$0xf]
        %v728 = vld [vmem:[%s720 + $0x1c] sm:$0xf]
        %v729 = vld [vmem:[%s720 + $0x20] sm:$0xf]
        %v730 = vld [vmem:[%s720 + $0x24] sm:$0xf]
        %v731 = vld [vmem:[%s720 + $0x28] sm:$0xf]
        %v732 = vld [vmem:[%s720 + $0x2c] sm:$0xf]
        %v733 = vld [vmem:[%s720 + $0x30] sm:$0xf]
        %v734 = vld [vmem:[%s720 + $0x34] sm:$0xf]
        %v735 = vld [vmem:[%s720 + $0x38] sm:$0xf]
        %v736 = vld [vmem:[%s720 + $0x3c] sm:$0xf]
        %s737 = scalar_lea.vmem %s6, 1
        %v738 = vld [vmem:[%s737] sm:$0x1]
        %v740 = vlaneseq
        %v741 = vshrl.u32 %v740, 7
        %v742 = vsub.s32 0, %v741
        %v743 = vrot.slane %v738, %v742
        %v761 = vunpack.c.l.b16 %v721
        %v762 = vunpack.c.l.b16 %v722
        %v763 = vunpack.c.l.b16 %v723
        %v764 = vunpack.c.l.b16 %v724
        %v765 = vunpack.c.l.b16 %v725
        %v766 = vunpack.c.l.b16 %v726
        %v767 = vunpack.c.l.b16 %v727
        %v768 = vunpack.c.l.b16 %v728
        %v769 = vunpack.c.l.b16 %v729
        %v770 = vunpack.c.l.b16 %v730
        %v771 = vunpack.c.l.b16 %v731
        %v772 = vunpack.c.l.b16 %v732
        %v773 = vunpack.c.l.b16 %v733
        %v774 = vunpack.c.l.b16 %v734
        %v775 = vunpack.c.l.b16 %v735
        %v776 = vunpack.c.l.b16 %v736
        %v777 = vpack.c.b16 %v762, %v761
        %v778 = vpack.c.b16 %v764, %v763
        %v779 = vpack.c.b16 %v766, %v765
        %v780 = vpack.c.b16 %v768, %v767
        %v781 = vpack.c.b16 %v770, %v769
        %v782 = vpack.c.b16 %v772, %v771
        %v783 = vpack.c.b16 %v774, %v773
        %v784 = vpack.c.b16 %v776, %v775
        %793 = vmatprep.subr.bf16.mxu0 0
        %794 = vmatpush1.bf16.msra.mxu0 %v777
        %795 = vmatprep.subr.bf16.mxu0 0
        %796 = vmatpush1.bf16.msra.mxu0 %v778
        %797 = vmatprep.subr.bf16.mxu0 0
        %798 = vmatpush1.bf16.msra.mxu0 %v779
        %799 = vmatprep.subr.bf16.mxu0 0
        %800 = vmatpush1.bf16.msra.mxu0 %v780
        %801 = vmatprep.subr.bf16.mxu0 0
        %802 = vmatpush1.bf16.msra.mxu0 %v781
        %803 = vmatprep.subr.bf16.mxu0 0
        %804 = vmatpush1.bf16.msra.mxu0 %v782
        %805 = vmatprep.subr.bf16.mxu0 0
        %806 = vmatpush1.bf16.msra.mxu0 %v783
        %807 = vmatprep.subr.bf16.mxu0 0
        %808 = vmatpush1.bf16.msra.mxu0 %v784
        %809 = vmatprep.subr.bf16.mxu0 0
        %810 = vmatpush1.bf16.msra.mxu0 0
        %811 = vmatprep.subr.bf16.mxu0 0
        %812 = vmatpush1.bf16.msra.mxu0 0
        %813 = vmatprep.subr.bf16.mxu0 0
        %814 = vmatpush1.bf16.msra.mxu0 0
        %815 = vmatprep.subr.bf16.mxu0 0
        %816 = vmatpush1.bf16.msra.mxu0 0
        %817 = vmatprep.subr.bf16.mxu0 0
        %818 = vmatpush1.bf16.msra.mxu0 0
        %819 = vmatprep.subr.bf16.mxu0 0
        %820 = vmatpush1.bf16.msra.mxu0 0
        %821 = vmatprep.subr.bf16.mxu0 0
        %822 = vmatpush1.bf16.msra.mxu0 0
        %823 = vmatprep.subr.bf16.mxu0 0
        %824 = vmatpush1.bf16.msra.mxu0 0
        %825 = vmatprep.mubr.bf16.mxu0 0
        %826 = vmatmul.mubr.bf16.gmra.mrb[0].mxu0 %v719
        %v827 = vpop.f32.mrb[0].mxu0
        %v828 = vadd.f32 %v743, %v827
        %v829 = vpop.f32.mrb[0].mxu0
        %v830 = vpop.f32.mrb[0].mxu0
        %v831 = vadd.f32 %v743, %v830
        %v832 = vpop.f32.mrb[0].mxu0
        %833 = vdwg.mxu0
        %v834 = vmax.f32 %v828, 0.0
        %v835 = vmax.f32 %v831, 0.0
        %v836 = vadd.f32 %v600, %v834
        %v837 = vadd.f32 %v601, %v835
        %v838 = vpack.c.bf16 %v837, %v836
        %s839 = scalar_lea.vmem %s3, 128
        %v840 = vld [vmem:[%s839] sm:$0xf]
        %v841 = vld [vmem:[%s839 + $0x4] sm:$0xf]
        %v842 = vld [vmem:[%s839 + $0x8] sm:$0xf]
        %v843 = vld [vmem:[%s839 + $0xc] sm:$0xf]
        %v844 = vld [vmem:[%s839 + $0x10] sm:$0xf]
        %v845 = vld [vmem:[%s839 + $0x14] sm:$0xf]
        %v846 = vld [vmem:[%s839 + $0x18] sm:$0xf]
        %v847 = vld [vmem:[%s839 + $0x1c] sm:$0xf]
        %v848 = vld [vmem:[%s839 + $0x20] sm:$0xf]
        %v849 = vld [vmem:[%s839 + $0x24] sm:$0xf]
        %v850 = vld [vmem:[%s839 + $0x28] sm:$0xf]
        %v851 = vld [vmem:[%s839 + $0x2c] sm:$0xf]
        %v852 = vld [vmem:[%s839 + $0x30] sm:$0xf]
        %v853 = vld [vmem:[%s839 + $0x34] sm:$0xf]
        %v854 = vld [vmem:[%s839 + $0x38] sm:$0xf]
        %v855 = vld [vmem:[%s839 + $0x3c] sm:$0xf]
        %s856 = scalar_lea.vmem %s4, 2
        %v857 = vld [vmem:[%s856] sm:$0x1]
        %v859 = vlaneseq
        %v860 = vshrl.u32 %v859, 7
        %v861 = vsub.s32 0, %v860
        %v862 = vrot.slane %v857, %v861
        %v880 = vunpack.c.l.b16 %v840
        %v881 = vunpack.c.l.b16 %v841
        %v882 = vunpack.c.l.b16 %v842
        %v883 = vunpack.c.l.b16 %v843
        %v884 = vunpack.c.l.b16 %v844
        %v885 = vunpack.c.l.b16 %v845
        %v886 = vunpack.c.l.b16 %v846
        %v887 = vunpack.c.l.b16 %v847
        %v888 = vunpack.c.l.b16 %v848
        %v889 = vunpack.c.l.b16 %v849
        %v890 = vunpack.c.l.b16 %v850
        %v891 = vunpack.c.l.b16 %v851
        %v892 = vunpack.c.l.b16 %v852
        %v893 = vunpack.c.l.b16 %v853
        %v894 = vunpack.c.l.b16 %v854
        %v895 = vunpack.c.l.b16 %v855
        %v896 = vpack.c.b16 %v881, %v880
        %v897 = vpack.c.b16 %v883, %v882
        %v898 = vpack.c.b16 %v885, %v884
        %v899 = vpack.c.b16 %v887, %v886
        %v900 = vpack.c.b16 %v889, %v888
        %v901 = vpack.c.b16 %v891, %v890
        %v902 = vpack.c.b16 %v893, %v892
        %v903 = vpack.c.b16 %v895, %v894
        %912 = vmatprep.subr.bf16.mxu0 0
        %913 = vmatpush1.bf16.msra.mxu0 %v896
        %914 = vmatprep.subr.bf16.mxu0 0
        %915 = vmatpush1.bf16.msra.mxu0 %v897
        %916 = vmatprep.subr.bf16.mxu0 0
        %917 = vmatpush1.bf16.msra.mxu0 %v898
        %918 = vmatprep.subr.bf16.mxu0 0
        %919 = vmatpush1.bf16.msra.mxu0 %v899
        %920 = vmatprep.subr.bf16.mxu0 0
        %921 = vmatpush1.bf16.msra.mxu0 %v900
        %922 = vmatprep.subr.bf16.mxu0 0
        %923 = vmatpush1.bf16.msra.mxu0 %v901
        %924 = vmatprep.subr.bf16.mxu0 0
        %925 = vmatpush1.bf16.msra.mxu0 %v902
        %926 = vmatprep.subr.bf16.mxu0 0
        %927 = vmatpush1.bf16.msra.mxu0 %v903
        %928 = vmatprep.subr.bf16.mxu0 0
        %929 = vmatpush1.bf16.msra.mxu0 0
        %930 = vmatprep.subr.bf16.mxu0 0
        %931 = vmatpush1.bf16.msra.mxu0 0
        %932 = vmatprep.subr.bf16.mxu0 0
        %933 = vmatpush1.bf16.msra.mxu0 0
        %934 = vmatprep.subr.bf16.mxu0 0
        %935 = vmatpush1.bf16.msra.mxu0 0
        %936 = vmatprep.subr.bf16.mxu0 0
        %937 = vmatpush1.bf16.msra.mxu0 0
        %938 = vmatprep.subr.bf16.mxu0 0
        %939 = vmatpush1.bf16.msra.mxu0 0
        %940 = vmatprep.subr.bf16.mxu0 0
        %941 = vmatpush1.bf16.msra.mxu0 0
        %942 = vmatprep.subr.bf16.mxu0 0
        %943 = vmatpush1.bf16.msra.mxu0 0
        %944 = vmatprep.mubr.bf16.mxu0 0
        %945 = vmatmul.mubr.bf16.gmra.mrb[0].mxu0 %v838
        %v946 = vpop.f32.mrb[0].mxu0
        %v947 = vadd.f32 %v862, %v946
        %v948 = vpop.f32.mrb[0].mxu0
        %v949 = vpop.f32.mrb[0].mxu0
        %v950 = vadd.f32 %v862, %v949
        %v951 = vpop.f32.mrb[0].mxu0
        %952 = vdwg.mxu0
        %v953 = vmax.f32 %v947, 0.0
        %v954 = vmax.f32 %v950, 0.0
        %v955 = vpack.c.bf16 %v954, %v953
        %s956 = scalar_lea.vmem %s5, 128
        %v957 = vld [vmem:[%s956] sm:$0xf]
        %v958 = vld [vmem:[%s956 + $0x4] sm:$0xf]
        %v959 = vld [vmem:[%s956 + $0x8] sm:$0xf]
        %v960 = vld [vmem:[%s956 + $0xc] sm:$0xf]
        %v961 = vld [vmem:[%s956 + $0x10] sm:$0xf]
        %v962 = vld [vmem:[%s956 + $0x14] sm:$0xf]
        %v963 = vld [vmem:[%s956 + $0x18] sm:$0xf]
        %v964 = vld [vmem:[%s956 + $0x1c] sm:$0xf]
        %v965 = vld [vmem:[%s956 + $0x20] sm:$0xf]
        %v966 = vld [vmem:[%s956 + $0x24] sm:$0xf]
        %v967 = vld [vmem:[%s956 + $0x28] sm:$0xf]
        %v968 = vld [vmem:[%s956 + $0x2c] sm:$0xf]
        %v969 = vld [vmem:[%s956 + $0x30] sm:$0xf]
        %v970 = vld [vmem:[%s956 + $0x34] sm:$0xf]
        %v971 = vld [vmem:[%s956 + $0x38] sm:$0xf]
        %v972 = vld [vmem:[%s956 + $0x3c] sm:$0xf]
        %s973 = scalar_lea.vmem %s6, 2
        %v974 = vld [vmem:[%s973] sm:$0x1]
        %v976 = vlaneseq
        %v977 = vshrl.u32 %v976, 7
        %v978 = vsub.s32 0, %v977
        %v979 = vrot.slane %v974, %v978
        %v997 = vunpack.c.l.b16 %v957
        %v998 = vunpack.c.l.b16 %v958
        %v999 = vunpack.c.l.b16 %v959
        %v1000 = vunpack.c.l.b16 %v960
        %v1001 = vunpack.c.l.b16 %v961
        %v1002 = vunpack.c.l.b16 %v962
        %v1003 = vunpack.c.l.b16 %v963
        %v1004 = vunpack.c.l.b16 %v964
        %v1005 = vunpack.c.l.b16 %v965
        %v1006 = vunpack.c.l.b16 %v966
        %v1007 = vunpack.c.l.b16 %v967
        %v1008 = vunpack.c.l.b16 %v968
        %v1009 = vunpack.c.l.b16 %v969
        %v1010 = vunpack.c.l.b16 %v970
        %v1011 = vunpack.c.l.b16 %v971
        %v1012 = vunpack.c.l.b16 %v972
        %v1013 = vpack.c.b16 %v998, %v997
        %v1014 = vpack.c.b16 %v1000, %v999
        %v1015 = vpack.c.b16 %v1002, %v1001
        %v1016 = vpack.c.b16 %v1004, %v1003
        %v1017 = vpack.c.b16 %v1006, %v1005
        %v1018 = vpack.c.b16 %v1008, %v1007
        %v1019 = vpack.c.b16 %v1010, %v1009
        %v1020 = vpack.c.b16 %v1012, %v1011
        %1029 = vmatprep.subr.bf16.mxu0 0
        %1030 = vmatpush1.bf16.msra.mxu0 %v1013
        %1031 = vmatprep.subr.bf16.mxu0 0
        %1032 = vmatpush1.bf16.msra.mxu0 %v1014
        %1033 = vmatprep.subr.bf16.mxu0 0
        %1034 = vmatpush1.bf16.msra.mxu0 %v1015
        %1035 = vmatprep.subr.bf16.mxu0 0
        %1036 = vmatpush1.bf16.msra.mxu0 %v1016
        %1037 = vmatprep.subr.bf16.mxu0 0
        %1038 = vmatpush1.bf16.msra.mxu0 %v1017
        %1039 = vmatprep.subr.bf16.mxu0 0
        %1040 = vmatpush1.bf16.msra.mxu0 %v1018
        %1041 = vmatprep.subr.bf16.mxu0 0
        %1042 = vmatpush1.bf16.msra.mxu0 %v1019
        %1043 = vmatprep.subr.bf16.mxu0 0
        %1044 = vmatpush1.bf16.msra.mxu0 %v1020
        %1045 = vmatprep.subr.bf16.mxu0 0
        %1046 = vmatpush1.bf16.msra.mxu0 0
        %1047 = vmatprep.subr.bf16.mxu0 0
        %1048 = vmatpush1.bf16.msra.mxu0 0
        %1049 = vmatprep.subr.bf16.mxu0 0
        %1050 = vmatpush1.bf16.msra.mxu0 0
        %1051 = vmatprep.subr.bf16.mxu0 0
        %1052 = vmatpush1.bf16.msra.mxu0 0
        %1053 = vmatprep.subr.bf16.mxu0 0
        %1054 = vmatpush1.bf16.msra.mxu0 0
        %1055 = vmatprep.subr.bf16.mxu0 0
        %1056 = vmatpush1.bf16.msra.mxu0 0
        %1057 = vmatprep.subr.bf16.mxu0 0
        %1058 = vmatpush1.bf16.msra.mxu0 0
        %1059 = vmatprep.subr.bf16.mxu0 0
        %1060 = vmatpush1.bf16.msra.mxu0 0
        %1061 = vmatprep.mubr.bf16.mxu0 0
        %1062 = vmatmul.mubr.bf16.gmra.mrb[0].mxu0 %v955
        %v1063 = vpop.f32.mrb[0].mxu0
        %v1064 = vadd.f32 %v979, %v1063
        %v1065 = vpop.f32.mrb[0].mxu0
        %v1066 = vpop.f32.mrb[0].mxu0
        %v1067 = vadd.f32 %v979, %v1066
        %v1068 = vpop.f32.mrb[0].mxu0
        %1069 = vdwg.mxu0
        %v1070 = vmax.f32 %v1064, 0.0
        %v1071 = vmax.f32 %v1067, 0.0
        %v1072 = vadd.f32 %v836, %v1070
        %v1073 = vadd.f32 %v837, %v1071
        %v1074 = vpack.c.bf16 %v1073, %v1072
        %s1075 = scalar_lea.vmem %s3, 192
        %v1076 = vld [vmem:[%s1075] sm:$0xf]
        %v1077 = vld [vmem:[%s1075 + $0x4] sm:$0xf]
        %v1078 = vld [vmem:[%s1075 + $0x8] sm:$0xf]
        %v1079 = vld [vmem:[%s1075 + $0xc] sm:$0xf]
        %v1080 = vld [vmem:[%s1075 + $0x10] sm:$0xf]
        %v1081 = vld [vmem:[%s1075 + $0x14] sm:$0xf]
        %v1082 = vld [vmem:[%s1075 + $0x18] sm:$0xf]
        %v1083 = vld [vmem:[%s1075 + $0x1c] sm:$0xf]
        %v1084 = vld [vmem:[%s1075 + $0x20] sm:$0xf]
        %v1085 = vld [vmem:[%s1075 + $0x24] sm:$0xf]
        %v1086 = vld [vmem:[%s1075 + $0x28] sm:$0xf]
        %v1087 = vld [vmem:[%s1075 + $0x2c] sm:$0xf]
        %v1088 = vld [vmem:[%s1075 + $0x30] sm:$0xf]
        %v1089 = vld [vmem:[%s1075 + $0x34] sm:$0xf]
        %v1090 = vld [vmem:[%s1075 + $0x38] sm:$0xf]
        %v1091 = vld [vmem:[%s1075 + $0x3c] sm:$0xf]
        %s1092 = scalar_lea.vmem %s4, 3
        %v1093 = vld [vmem:[%s1092] sm:$0x1]
        %v1095 = vlaneseq
        %v1096 = vshrl.u32 %v1095, 7
        %v1097 = vsub.s32 0, %v1096
        %v1098 = vrot.slane %v1093, %v1097
        %v1116 = vunpack.c.l.b16 %v1076
        %v1117 = vunpack.c.l.b16 %v1077
        %v1118 = vunpack.c.l.b16 %v1078
        %v1119 = vunpack.c.l.b16 %v1079
        %v1120 = vunpack.c.l.b16 %v1080
        %v1121 = vunpack.c.l.b16 %v1081
        %v1122 = vunpack.c.l.b16 %v1082
        %v1123 = vunpack.c.l.b16 %v1083
        %v1124 = vunpack.c.l.b16 %v1084
        %v1125 = vunpack.c.l.b16 %v1085
        %v1126 = vunpack.c.l.b16 %v1086
        %v1127 = vunpack.c.l.b16 %v1087
        %v1128 = vunpack.c.l.b16 %v1088
        %v1129 = vunpack.c.l.b16 %v1089
        %v1130 = vunpack.c.l.b16 %v1090
        %v1131 = vunpack.c.l.b16 %v1091
        %v1132 = vpack.c.b16 %v1117, %v1116
        %v1133 = vpack.c.b16 %v1119, %v1118
        %v1134 = vpack.c.b16 %v1121, %v1120
        %v1135 = vpack.c.b16 %v1123, %v1122
        %v1136 = vpack.c.b16 %v1125, %v1124
        %v1137 = vpack.c.b16 %v1127, %v1126
        %v1138 = vpack.c.b16 %v1129, %v1128
        %v1139 = vpack.c.b16 %v1131, %v1130
        %1148 = vmatprep.subr.bf16.mxu0 0
        %1149 = vmatpush1.bf16.msra.mxu0 %v1132
        %1150 = vmatprep.subr.bf16.mxu0 0
        %1151 = vmatpush1.bf16.msra.mxu0 %v1133
        %1152 = vmatprep.subr.bf16.mxu0 0
        %1153 = vmatpush1.bf16.msra.mxu0 %v1134
        %1154 = vmatprep.subr.bf16.mxu0 0
        %1155 = vmatpush1.bf16.msra.mxu0 %v1135
        %1156 = vmatprep.subr.bf16.mxu0 0
        %1157 = vmatpush1.bf16.msra.mxu0 %v1136
        %1158 = vmatprep.subr.bf16.mxu0 0
        %1159 = vmatpush1.bf16.msra.mxu0 %v1137
        %1160 = vmatprep.subr.bf16.mxu0 0
        %1161 = vmatpush1.bf16.msra.mxu0 %v1138
        %1162 = vmatprep.subr.bf16.mxu0 0
        %1163 = vmatpush1.bf16.msra.mxu0 %v1139
        %1164 = vmatprep.subr.bf16.mxu0 0
        %1165 = vmatpush1.bf16.msra.mxu0 0
        %1166 = vmatprep.subr.bf16.mxu0 0
        %1167 = vmatpush1.bf16.msra.mxu0 0
        %1168 = vmatprep.subr.bf16.mxu0 0
        %1169 = vmatpush1.bf16.msra.mxu0 0
        %1170 = vmatprep.subr.bf16.mxu0 0
        %1171 = vmatpush1.bf16.msra.mxu0 0
        %1172 = vmatprep.subr.bf16.mxu0 0
        %1173 = vmatpush1.bf16.msra.mxu0 0
        %1174 = vmatprep.subr.bf16.mxu0 0
        %1175 = vmatpush1.bf16.msra.mxu0 0
        %1176 = vmatprep.subr.bf16.mxu0 0
        %1177 = vmatpush1.bf16.msra.mxu0 0
        %1178 = vmatprep.subr.bf16.mxu0 0
        %1179 = vmatpush1.bf16.msra.mxu0 0
        %1180 = vmatprep.mubr.bf16.mxu0 0
        %1181 = vmatmul.mubr.bf16.gmra.mrb[0].mxu0 %v1074
        %v1182 = vpop.f32.mrb[0].mxu0
        %v1183 = vadd.f32 %v1098, %v1182
        %v1184 = vpop.f32.mrb[0].mxu0
        %v1185 = vpop.f32.mrb[0].mxu0
        %v1186 = vadd.f32 %v1098, %v1185
        %v1187 = vpop.f32.mrb[0].mxu0
        %1188 = vdwg.mxu0
        %v1189 = vmax.f32 %v1183, 0.0
        %v1190 = vmax.f32 %v1186, 0.0
        %v1191 = vpack.c.bf16 %v1190, %v1189
        %s1192 = scalar_lea.vmem %s5, 192
        %v1193 = vld [vmem:[%s1192] sm:$0xf]
        %v1194 = vld [vmem:[%s1192 + $0x4] sm:$0xf]
        %v1195 = vld [vmem:[%s1192 + $0x8] sm:$0xf]
        %v1196 = vld [vmem:[%s1192 + $0xc] sm:$0xf]
        %v1197 = vld [vmem:[%s1192 + $0x10] sm:$0xf]
        %v1198 = vld [vmem:[%s1192 + $0x14] sm:$0xf]
        %v1199 = vld [vmem:[%s1192 + $0x18] sm:$0xf]
        %v1200 = vld [vmem:[%s1192 + $0x1c] sm:$0xf]
        %v1201 = vld [vmem:[%s1192 + $0x20] sm:$0xf]
        %v1202 = vld [vmem:[%s1192 + $0x24] sm:$0xf]
        %v1203 = vld [vmem:[%s1192 + $0x28] sm:$0xf]
        %v1204 = vld [vmem:[%s1192 + $0x2c] sm:$0xf]
        %v1205 = vld [vmem:[%s1192 + $0x30] sm:$0xf]
        %v1206 = vld [vmem:[%s1192 + $0x34] sm:$0xf]
        %v1207 = vld [vmem:[%s1192 + $0x38] sm:$0xf]
        %v1208 = vld [vmem:[%s1192 + $0x3c] sm:$0xf]
        %s1209 = scalar_lea.vmem %s6, 3
        %v1210 = vld [vmem:[%s1209] sm:$0x1]
        %v1212 = vlaneseq
        %v1213 = vshrl.u32 %v1212, 7
        %v1214 = vsub.s32 0, %v1213
        %v1215 = vrot.slane %v1210, %v1214
        %v1233 = vunpack.c.l.b16 %v1193
        %v1234 = vunpack.c.l.b16 %v1194
        %v1235 = vunpack.c.l.b16 %v1195
        %v1236 = vunpack.c.l.b16 %v1196
        %v1237 = vunpack.c.l.b16 %v1197
        %v1238 = vunpack.c.l.b16 %v1198
        %v1239 = vunpack.c.l.b16 %v1199
        %v1240 = vunpack.c.l.b16 %v1200
        %v1241 = vunpack.c.l.b16 %v1201
        %v1242 = vunpack.c.l.b16 %v1202
        %v1243 = vunpack.c.l.b16 %v1203
        %v1244 = vunpack.c.l.b16 %v1204
        %v1245 = vunpack.c.l.b16 %v1205
        %v1246 = vunpack.c.l.b16 %v1206
        %v1247 = vunpack.c.l.b16 %v1207
        %v1248 = vunpack.c.l.b16 %v1208
        %v1249 = vpack.c.b16 %v1234, %v1233
        %v1250 = vpack.c.b16 %v1236, %v1235
        %v1251 = vpack.c.b16 %v1238, %v1237
        %v1252 = vpack.c.b16 %v1240, %v1239
        %v1253 = vpack.c.b16 %v1242, %v1241
        %v1254 = vpack.c.b16 %v1244, %v1243
        %v1255 = vpack.c.b16 %v1246, %v1245
        %v1256 = vpack.c.b16 %v1248, %v1247
        %1265 = vmatprep.subr.bf16.mxu0 0
        %1266 = vmatpush1.bf16.msra.mxu0 %v1249
        %1267 = vmatprep.subr.bf16.mxu0 0
        %1268 = vmatpush1.bf16.msra.mxu0 %v1250
        %1269 = vmatprep.subr.bf16.mxu0 0
        %1270 = vmatpush1.bf16.msra.mxu0 %v1251
        %1271 = vmatprep.subr.bf16.mxu0 0
        %1272 = vmatpush1.bf16.msra.mxu0 %v1252
        %1273 = vmatprep.subr.bf16.mxu0 0
        %1274 = vmatpush1.bf16.msra.mxu0 %v1253
        %1275 = vmatprep.subr.bf16.mxu0 0
        %1276 = vmatpush1.bf16.msra.mxu0 %v1254
        %1277 = vmatprep.subr.bf16.mxu0 0
        %1278 = vmatpush1.bf16.msra.mxu0 %v1255
        %1279 = vmatprep.subr.bf16.mxu0 0
        %1280 = vmatpush1.bf16.msra.mxu0 %v1256
        %1281 = vmatprep.subr.bf16.mxu0 0
        %1282 = vmatpush1.bf16.msra.mxu0 0
        %1283 = vmatprep.subr.bf16.mxu0 0
        %1284 = vmatpush1.bf16.msra.mxu0 0
        %1285 = vmatprep.subr.bf16.mxu0 0
        %1286 = vmatpush1.bf16.msra.mxu0 0
        %1287 = vmatprep.subr.bf16.mxu0 0
        %1288 = vmatpush1.bf16.msra.mxu0 0
        %1289 = vmatprep.subr.bf16.mxu0 0
        %1290 = vmatpush1.bf16.msra.mxu0 0
        %1291 = vmatprep.subr.bf16.mxu0 0
        %1292 = vmatpush1.bf16.msra.mxu0 0
        %1293 = vmatprep.subr.bf16.mxu0 0
        %1294 = vmatpush1.bf16.msra.mxu0 0
        %1295 = vmatprep.subr.bf16.mxu0 0
        %1296 = vmatpush1.bf16.msra.mxu0 0
        %1297 = vmatprep.mubr.bf16.mxu0 0
        %1298 = vmatmul.mubr.bf16.gmra.mrb[0].mxu0 %v1191
        %v1299 = vpop.f32.mrb[0].mxu0
        %v1300 = vadd.f32 %v1215, %v1299
        %v1301 = vpop.f32.mrb[0].mxu0
        %v1302 = vpop.f32.mrb[0].mxu0
        %v1303 = vadd.f32 %v1215, %v1302
        %v1304 = vpop.f32.mrb[0].mxu0
        %1305 = vdwg.mxu0
        %v1306 = vmax.f32 %v1300, 0.0
        %v1307 = vmax.f32 %v1303, 0.0
        %v1308 = vadd.f32 %v1072, %v1306
        %v1309 = vadd.f32 %v1073, %v1307
        %1310 = vst [vmem:[%s284] sm:$0xff] %v1308
        %1311 = vst [vmem:[%s284 + $0x8] sm:$0xff] %v1309
        %s1312 = sand.u32 %s181, 1
        %s1313 = scalar_lea.sflag [#allocation3], %s1312
        %s1314 = sand.u32 %s181, 1
        %s1315 = smul.addr %s1314, 16
        %s1316 = scalar_lea.vmem [#allocation2], %s1315
        // Predicated region
        $region49: #{fcnet_feats.1} parent=47 // pred_check
          %p1317 = pneg %p191
        $region50: #{fcnet_feats.1} parent=47 // pred_check_branch
          %1319 = sbr.rel (%p1317) target = $region52
        $region51: #{fcnet_feats.1} parent=47 // pred_region
          %s1320 = smul.u32 2, %s21
          %s1321 = ssub.s32 3, %s1320
          %p1322 = scmp.lt.s32.totalorder %s1321, 2
          %s1323 = scalar_select %p1322, %s1321, 2
          %s1324 = smul.u32 128, %s1323
          %s1326 = ssub.s32 256, %s1324
          %1327 = vsyncadd %s1313, %s1326
          %p1328 = scmp.ne.s32.totalorder 0, %s1324
          %s1329 = smul.addr %s1320, 128
          %s1330 = scalar_lea.hbm %s7, %s1329
          %s1331 = smul.u32 8, %s1323
          %s1332 = sshll.u32 %s1316, 4
          %s1333 = int_to_ptr.vmem [resolvable:$true] %s1332
          %s1334 = sshll.u32 %s1331, 4
          %1338 = dma.vmem_to_hbm [thread:$0]  (%p1328), %s1333, %s1334, %s1330, %s1313, 128, 128, 8
        $region52: #{fcnet_feats.1} parent=47 // pred_fallthru
          _
      $region48: #{fcnet_feats.1} parent=5 // pred_fallthru
        _
      %p1339 = scmp.le.s32.totalorder 2, %s16
      // Predicated region
      $region53: #{fcnet_feats.1} parent=5 // pred_check
        %p1340 = pneg %p1339
      $region54: #{fcnet_feats.1} parent=5 // pred_check_branch
        %1342 = sbr.rel (%p1340) target = $region56
      $region55: #{fcnet_feats.1} parent=5 // pred_region
        %s1343 = ssub.s32 %s16, 2
        // Predicated region
        $region57: #{fcnet_feats.1} parent=55 // pred_check
          %p1344 = pneg %p197
        $region58: #{fcnet_feats.1} parent=55 // pred_check_branch
          %1346 = sbr.rel (%p1344) target = $region60
        $region59: #{fcnet_feats.1} parent=55 // pred_region
          %s1347 = sand.u32 %s182, 1
          %s1348 = scalar_lea.sflag [#allocation3], %s1347
          %s1349 = sand.u32 %s182, 1
          %s1350 = smul.addr %s1349, 16
          %s1351 = scalar_lea.vmem [#allocation2], %s1350
          %1352 = dma.done %s1348, 256
        $region60: #{fcnet_feats.1} parent=55 // pred_fallthru
          _
      $region56: #{fcnet_feats.1} parent=5 // pred_fallthru
        _
    $region6: #{fcnet_feats.1} parent=1 // loop_footer
      %s20 = sadd.s32 1, %s16
    $region7: #{fcnet_feats.1} parent=1 // loop_footer_branch
      %15 = sbr.rel target = $region3
    $region8: #{fcnet_feats.1} parent=1 // loop_exit
      _
    %1353 = vsyncpa [#allocation3], 1
    %s1354 = scalar_lea.sflag [#allocation3], 1
    %1355 = vsyncpa %s1354, 1

</llo_original>
